<compile_context>
chip_gen: v5e
topology: v5e:2x2
jax: 0.10.0
libtpu: 0.0.40
codegen_flags: <defaults>
</compile_context>

<pallas_src>
import jax
import jax.numpy as jnp
from jax.experimental import pallas as pl
from jax.experimental.pallas import tpu as pltpu


def _sigmoid_mul_kernel(gate_ref, x_ref, o_ref):
    # gate_ref: (TC, 1)   x_ref / o_ref: (TC, HW)
    g = jax.nn.sigmoid(gate_ref[...])                 # EUP sigmoid on a tiny column
    # Explicit cast on the store keeps mixed precision (f32 gate * bf16 x) correct.
    o_ref[...] = (g * x_ref[...]).astype(o_ref.dtype)  # broadcast over the lane axis


def _round_up(x, m):
    return (x + m - 1) // m * m


def _sublane_multiple(dtype):
    # Sub-32-bit dtypes pack along sublanes: 8 rows for f32, 16 for bf16, 32 for int8/fp8.
    return max(8, 32 // jnp.dtype(dtype).itemsize)


def _choose_tile_c(nc, hw, dtype, *, max_tile_bytes=4 << 20, min_steps=2):
    """Channel-row tile: a multiple of the dtype's sublane quantum, capped at
    ~4 MB per (tile_c, hw) block, targeting `min_steps` balanced grid steps
    (2 -> one block per v7x TensorCore; >=2 keeps the auto-pipeline overlapped
    on single-TC v5e/v6e while minimizing per-step overhead)."""
    itemsize = jnp.dtype(dtype).itemsize
    sub = _sublane_multiple(dtype)
    cap = max(sub, (max_tile_bytes // max(hw * itemsize, 1)) // sub * sub)
    per_step = _round_up(pl.cdiv(nc, min_steps), sub)
    return max(sub, min(cap, per_step, _round_up(nc, sub)))


def sigmoid_mul(gate, x, *, donate_x=False):
    """gate: (N, C, 1, 1), x: (N, C, H, W)  ->  sigmoid(gate) * x  (N, C, H, W)."""
    N, C, H, W = x.shape
    assert gate.shape == (N, C, 1, 1)
    NC, HW = N * C, H * W

    x2 = x.reshape(NC, HW)
    g2 = gate.reshape(NC, 1)

    tile_c = _choose_tile_c(NC, HW, x2.dtype)
    grid = (pl.cdiv(NC, tile_c),)   # ragged last block handled by Pallas (elementwise op)

    out2 = pl.pallas_call(
        _sigmoid_mul_kernel,
        out_shape=jax.ShapeDtypeStruct((NC, HW), x.dtype),
        grid_spec=pltpu.PrefetchScalarGridSpec(
            num_scalar_prefetch=0,
            grid=grid,
            in_specs=[
                pl.BlockSpec((tile_c, 1), lambda i: (i, 0)),    # per-channel gate tile
                pl.BlockSpec((tile_c, HW), lambda i: (i, 0)),   # activation tile
            ],
            out_specs=pl.BlockSpec((tile_c, HW), lambda i: (i, 0)),
        ),
        compiler_params=pltpu.CompilerParams(
            dimension_semantics=("parallel",),   # independent tiles -> v7x megacore split
        ),
        # Only alias x into the output when the caller guarantees x is dead afterwards.
        input_output_aliases=({1: 0} if donate_x else {}),
    )(g2, x2)

    return out2.reshape(N, C, H, W)


if __name__ == "__main__":
    key = jax.random.PRNGKey(0)
    k1, k2 = jax.random.split(key)

    # Shapes implied by the module's forward: x113 = (1, 696, 1, 1), x109 = (1, 696, 28, 28)
    N, C, H, W = 1, 696, 28, 28
    x113 = jax.random.normal(k1, (N, C, 1, 1), dtype=jnp.float32)   # gate
    x109 = jax.random.normal(k2, (N, C, H, W), dtype=jnp.float32)   # activations

    out = sigmoid_mul(x113, x109)
    out = jax.block_until_ready(out)

    # Correctness check against plain-JAX reference.
    ref = jax.nn.sigmoid(x113) * x109
    assert out.shape == (N, C, H, W)
    assert jnp.allclose(out, ref, atol=1e-6, rtol=1e-6), "mismatch vs reference"

    print("KERNEL_OK")
</pallas_src>

<mosaic_0001>
module attributes {stable_mosaic.version = 11 : i64} {
  func.func @_sigmoid_mul_kernel(%arg0: i32, %arg1: memref<352x1xf32, #tpu.memory_space<vmem>>, %arg2: memref<352x784xf32, #tpu.memory_space<vmem>>, %arg3: memref<352x784xf32, #tpu.memory_space<vmem>>) attributes {dimension_semantics = [#tpu.dimension_semantics<parallel>], iteration_bounds = array<i64: 2>, scalar_prefetch = 0 : i64, scratch_operands = 0 : i64, tpu.core_type = #tpu.core_type<tc>, window_params = [{transform_indices = @transform_0, window_bounds = array<i64: 352, 1>}, {transform_indices = @transform_1, window_bounds = array<i64: 352, 784>}, {transform_indices = @transform_2, window_bounds = array<i64: 352, 784>}]} {
    %c0 = arith.constant 0 : index
    %c0_0 = arith.constant 0 : index
    %0 = vector.load %arg1[%c0, %c0_0] : memref<352x1xf32, #tpu.memory_space<vmem>>, vector<352x1xf32>
    %1 = arith.negf %0 : vector<352x1xf32>
    %2 = math.exp %1 : vector<352x1xf32>
    %cst = arith.constant 1.000000e+00 : f32
    %3 = vector.broadcast %cst : f32 to vector<352x1xf32>
    %4 = arith.addf %3, %2 : vector<352x1xf32>
    %5 = arith.divf %3, %4 : vector<352x1xf32>
    %c0_1 = arith.constant 0 : index
    %c0_2 = arith.constant 0 : index
    %6 = vector.load %arg2[%c0_1, %c0_2] : memref<352x784xf32, #tpu.memory_space<vmem>>, vector<352x784xf32>
    %7 = vector.broadcast %5 : vector<352x1xf32> to vector<352x784xf32>
    %8 = arith.mulf %7, %6 : vector<352x784xf32>
    %c0_3 = arith.constant 0 : index
    %c0_4 = arith.constant 0 : index
    %9 = vector.load %arg3[%c0_3, %c0_4] : memref<352x784xf32, #tpu.memory_space<vmem>>, vector<352x784xf32>
    tpu.vector_store %arg3[%c0_3, %c0_4], %8 {strides = array<i32>} : memref<352x784xf32, #tpu.memory_space<vmem>>, vector<352x784xf32>,
    return
  }
  func.func @transform_0(%arg0: i32) -> (i32, i32) {
    %c0_i32 = arith.constant 0 : i32
    %c0_i32_0 = arith.constant 0 : i32
    return %arg0, %c0_i32 : i32, i32
  }
  func.func @transform_1(%arg0: i32) -> (i32, i32) {
    %c0_i32 = arith.constant 0 : i32
    %c0_i32_0 = arith.constant 0 : i32
    return %arg0, %c0_i32 : i32, i32
  }
  func.func @transform_2(%arg0: i32) -> (i32, i32) {
    %c0_i32 = arith.constant 0 : i32
    %c0_i32_0 = arith.constant 0 : i32
    return %arg0, %c0_i32 : i32, i32
  }
}

</mosaic_0001>

<llo_original>
// kernel: tpu_custom_call.1
$region0: #{tpu_custom_call.1}
  #allocation0 [shape = 'u32[]', space=smem, size = 0x4, offset = 0x4, fixed_abs, tag = 'smem constant byte address 0x4 - core index']
  #allocation1 [shape = 'u32[72,128]{1,0:T(1,128)}', space=vmem, size = 0x9000, scoped, tag = 'internal scratch']
  %s0 = inlined_call_operand.vmem [shape: f32[696,1], index: 0, kind: input, shape index: {}]
  %s1 = inlined_call_operand.vmem [shape: f32[696,784], index: 1, kind: input, shape index: {}]
  %s2 = inlined_call_operand.vmem [shape: f32[696,784], index: 2, kind: output, shape index: {}]
  %s3 = sld [smem:[#allocation0]]
  $region67: #{tpu_custom_call.1} parent=0
    _
  %s5 = ssub.s32 1, %s3
  %s6 = scalar_select 0, %s5, %s3
  $region1: #{tpu_custom_call.1} parent=0
    #allocation2 [shape = 'u8[2523136]{0}', space=vmem, size = 0x268000, scoped, tag = 'output window, operand 0']
    loop: start=0, step=1, limit=4
    $region2: #{tpu_custom_call.1} parent=1 // loop_pre_header
      _
    $region3: #{tpu_custom_call.1} parent=1 // loop_header
      %s8 = sphi 0, %s12
      %p9 = scmp.ge.s32.totalorder %s8, 4
      %s18 = sphi 0, %s20
      %s21 = sphi 0, %s18
      %s22 = sphi 0, %s21
      %s38 = sphi 0, %s22
      %s44 = sphi 0, %s46
      %s47 = sphi 0, %s44
      %s48 = sphi 0, %s47
      %s64 = sphi 0, %s48
      %s70 = sphi 0, %s72
      %s73 = sphi 0, %s70
      %s74 = sphi 0, %s73
      %s90 = sphi 0, %s74
    $region4: #{tpu_custom_call.1} parent=1 // loop_header_branch
      %11 = sbr.rel (%p9) target = $region8
    $region5: #{tpu_custom_call.1} parent=1 // loop_body
      %s13 = ssub.s32 %s8, 1
      %s14 = ssub.s32 %s8, 2
      %s15 = sadd.s32 %s8, 1
      %s16 = ssub.s32 %s8, %s15
      %p17 = scmp.eq.s32.totalorder %s16, 0
      %s19 = sadd.s32 %s18, 1
      %s20 = scalar_select %p17, %s18, %s19
      %p23 = pneg %p17
      %p24 = scmp.eq.s32.totalorder %s8, 1
      %p25 = por %p23, %p24
      %p26 = scmp.ne.s32.totalorder %s18, %s21
      %p27 = scmp.eq.s32.totalorder %s8, 0
      %p28 = por %p26, %p27
      %p29 = scmp.ne.s32.totalorder %s18, %s21
      %p30 = scmp.eq.s32.totalorder %s13, 1
      %p31 = por %p29, %p30
      %p32 = scmp.ne.s32.totalorder %s21, %s22
      %p33 = scmp.eq.s32.totalorder %s13, 0
      %p34 = por %p32, %p33
      %p35 = scmp.ne.s32.totalorder %s21, %s22
      %p36 = scmp.eq.s32.totalorder %s14, 1
      %p37 = por %p35, %p36
      %p39 = scmp.ne.s32.totalorder %s22, %s38
      %p40 = scmp.eq.s32.totalorder %s14, 0
      %p41 = por %p39, %p40
      %s42 = ssub.s32 %s8, %s15
      %p43 = scmp.eq.s32.totalorder %s42, 0
      %s45 = sadd.s32 %s44, 1
      %s46 = scalar_select %p43, %s44, %s45
      %p49 = pneg %p43
      %p50 = scmp.eq.s32.totalorder %s8, 1
      %p51 = por %p49, %p50
      %p52 = scmp.ne.s32.totalorder %s44, %s47
      %p53 = scmp.eq.s32.totalorder %s8, 0
      %p54 = por %p52, %p53
      %p55 = scmp.ne.s32.totalorder %s44, %s47
      %p56 = scmp.eq.s32.totalorder %s13, 1
      %p57 = por %p55, %p56
      %p58 = scmp.ne.s32.totalorder %s47, %s48
      %p59 = scmp.eq.s32.totalorder %s13, 0
      %p60 = por %p58, %p59
      %p61 = scmp.ne.s32.totalorder %s47, %s48
      %p62 = scmp.eq.s32.totalorder %s14, 1
      %p63 = por %p61, %p62
      %p65 = scmp.ne.s32.totalorder %s48, %s64
      %p66 = scmp.eq.s32.totalorder %s14, 0
      %p67 = por %p65, %p66
      %s68 = ssub.s32 %s8, %s15
      %p69 = scmp.eq.s32.totalorder %s68, 0
      %s71 = sadd.s32 %s70, 1
      %s72 = scalar_select %p69, %s70, %s71
      %p75 = pneg %p69
      %p76 = scmp.eq.s32.totalorder %s8, 1
      %p77 = por %p75, %p76
      %p78 = scmp.ne.s32.totalorder %s70, %s73
      %p79 = scmp.eq.s32.totalorder %s8, 0
      %p80 = por %p78, %p79
      %p81 = scmp.ne.s32.totalorder %s70, %s73
      %p82 = scmp.eq.s32.totalorder %s13, 1
      %p83 = por %p81, %p82
      %p84 = scmp.ne.s32.totalorder %s73, %s74
      %p85 = scmp.eq.s32.totalorder %s13, 0
      %p86 = por %p84, %p85
      %p87 = scmp.ne.s32.totalorder %s73, %s74
      %p88 = scmp.eq.s32.totalorder %s14, 1
      %p89 = por %p87, %p88
      %p91 = scmp.ne.s32.totalorder %s74, %s90
      %p92 = scmp.eq.s32.totalorder %s14, 0
      %p93 = por %p91, %p92
      %p94 = scmp.le.s32.totalorder 1, %s8
      %p95 = scmp.lt.s32.totalorder %s8, 3
      %p96 = pnand %p94, %p95
      %p97 = pneg %p96
      // Predicated region
      $region9: #{tpu_custom_call.1} parent=5 // pred_check
        _
      $region10: #{tpu_custom_call.1} parent=5 // pred_check_branch
        %99 = sbr.rel (%p96) target = $region12
      $region11: #{tpu_custom_call.1} parent=5 // pred_region
        %s100 = ssub.s32 %s8, 1
      $region12: #{tpu_custom_call.1} parent=5 // pred_fallthru
        _
      %p101 = scmp.lt.s32.totalorder %s8, 2
      // Predicated region
      $region13: #{tpu_custom_call.1} parent=5 // pred_check
        %p102 = pneg %p101
      $region14: #{tpu_custom_call.1} parent=5 // pred_check_branch
        %104 = sbr.rel (%p102) target = $region16
      $region15: #{tpu_custom_call.1} parent=5 // pred_region
        // Predicated region
        $region17: #{tpu_custom_call.1} parent=15 // pred_check
          %p105 = pneg %p28
        $region18: #{tpu_custom_call.1} parent=15 // pred_check_branch
          %107 = sbr.rel (%p105) target = $region20
        $region19: #{tpu_custom_call.1} parent=15 // pred_region
          %s108 = smul.u32 44, %s8
          %s109 = ssub.s32 87, %s108
          %p110 = scmp.lt.s32.totalorder %s109, 44
          %s111 = scalar_select %p110, %s109, 44
          %s112 = smul.u32 8, %s111
          %p113 = scmp.lt.s32.totalorder %s108, 86
          %s114 = scalar_select %p113, %s108, 86
          %s115 = smul.addr %s114, 8
          %s116 = scalar_lea.vmem %s0, %s115
          %s117 = smul.u32 44, %s8
          %s118 = ssub.s32 87, %s117
          %p119 = scmp.lt.s32.totalorder %s118, 44
          %s120 = scalar_select %p119, %s118, 44
          %s121 = smul.u32 8, %s120
        $region20: #{tpu_custom_call.1} parent=15 // pred_fallthru
          _
        // Predicated region
        $region21: #{tpu_custom_call.1} parent=15 // pred_check
          %p122 = pneg %p54
        $region22: #{tpu_custom_call.1} parent=15 // pred_check_branch
          %124 = sbr.rel (%p122) target = $region24
        $region23: #{tpu_custom_call.1} parent=15 // pred_region
          %s125 = smul.u32 44, %s8
          %s126 = ssub.s32 87, %s125
          %p127 = scmp.lt.s32.totalorder %s126, 44
          %s128 = scalar_select %p127, %s126, 44
          %s129 = smul.u32 8, %s128
          %s130 = smul.u32 %s129, 7
          %p131 = scmp.lt.s32.totalorder %s125, 86
          %s132 = scalar_select %p131, %s125, 86
          %s133 = smul.addr %s132, 7
          %s134 = smul.addr %s133, 8
          %s135 = scalar_lea.vmem %s1, %s134
          %s136 = smul.u32 44, %s8
          %s137 = ssub.s32 87, %s136
          %p138 = scmp.lt.s32.totalorder %s137, 44
          %s139 = scalar_select %p138, %s137, 44
          %s140 = smul.u32 8, %s139
          %s141 = smul.u32 %s140, 7
        $region24: #{tpu_custom_call.1} parent=15 // pred_fallthru
          _
      $region16: #{tpu_custom_call.1} parent=5 // pred_fallthru
        _
      %p142 = scmp.le.s32.totalorder 1, %s8
      %p143 = scmp.lt.s32.totalorder %s8, 3
      %p144 = pnand %p142, %p143
      %p145 = pneg %p144
      // Predicated region
      $region25: #{tpu_custom_call.1} parent=5 // pred_check
        _
      $region26: #{tpu_custom_call.1} parent=5 // pred_check_branch
        %147 = sbr.rel (%p144) target = $region28
      $region27: #{tpu_custom_call.1} parent=5 // pred_region
        %s148 = ssub.s32 %s8, 1
        %s149 = smul.u32 44, %s13
        %s150 = ssub.s32 87, %s149
        %p151 = scmp.lt.s32.totalorder %s150, 44
        %s152 = scalar_select %p151, %s150, 44
        %s153 = smul.u32 8, %s152
        %p154 = scmp.lt.s32.totalorder %s149, 86
        %s155 = scalar_select %p154, %s149, 86
        %s156 = smul.addr %s155, 8
        %s157 = scalar_lea.vmem %s0, %s156
        %p158 = pneg %p34
        %p159 = pneg %p31
        %s160 = smul.u32 44, %s13
        %s161 = ssub.s32 87, %s160
        %p162 = scmp.lt.s32.totalorder %s161, 44
        %s163 = scalar_select %p162, %s161, 44
        %s164 = smul.u32 8, %s163
        %s165 = smul.u32 %s164, 7
        %p166 = scmp.lt.s32.totalorder %s160, 86
        %s167 = scalar_select %p166, %s160, 86
        %s168 = smul.addr %s167, 7
        %s169 = smul.addr %s168, 8
        %s170 = scalar_lea.vmem %s1, %s169
        %p171 = pneg %p60
        %p172 = pneg %p57
        %p173 = pneg %p86
        %p174 = pneg %p83
        %s175 = sand.u32 %s73, 1
        %s176 = sand.u32 %s73, 1
        %s177 = smul.addr %s176, 2464
        %s178 = scalar_lea.vmem [#allocation2], %s177
        %s179 = smul.u32 44, %s13
        %s180 = ssub.s32 87, %s179
        %p181 = scmp.lt.s32.totalorder %s180, 44
        %s182 = scalar_select %p181, %s180, 44
        %s183 = smul.u32 8, %s182
        %p184 = scmp.lt.s32.totalorder %s179, 86
        %s185 = scalar_select %p184, %s179, 86
        %s186 = smul.addr %s185, 8
        %s187 = scalar_lea.vmem %s0, %s186
        %s188 = smul.u32 44, %s13
        %s189 = ssub.s32 87, %s188
        %p190 = scmp.lt.s32.totalorder %s189, 44
        %s191 = scalar_select %p190, %s189, 44
        %s192 = smul.u32 8, %s191
        %s193 = smul.u32 44, %s13
        %s194 = ssub.s32 87, %s193
        %p195 = scmp.lt.s32.totalorder %s194, 44
        %s196 = scalar_select %p195, %s194, 44
        %s197 = smul.u32 8, %s196
        %s198 = smul.u32 %s197, 7
        %p199 = scmp.lt.s32.totalorder %s193, 86
        %s200 = scalar_select %p199, %s193, 86
        %s201 = smul.addr %s200, 7
        %s202 = smul.addr %s201, 8
        %s203 = scalar_lea.vmem %s1, %s202
        %s204 = smul.u32 44, %s13
        %s205 = ssub.s32 87, %s204
        %p206 = scmp.lt.s32.totalorder %s205, 44
        %s207 = scalar_select %p206, %s205, 44
        %s208 = smul.u32 8, %s207
        %s209 = smul.u32 %s208, 7
        %s210 = smul.u32 44, %s13
        %s211 = ssub.s32 87, %s210
        %p212 = scmp.lt.s32.totalorder %s211, 44
        %s213 = scalar_select %p212, %s211, 44
        %s214 = smul.u32 8, %s213
        %s215 = smul.u32 %s214, 7
        %v216 = vld [vmem:[%s187] sm:$0xff]
        %v217 = vld [vmem:[%s187 + $0x8] sm:$0xff]
        %v218 = vld [vmem:[%s187 + $0x10] sm:$0xff]
        %v219 = vld [vmem:[%s187 + $0x18] sm:$0xff]
        %v220 = vld [vmem:[%s187 + $0x20] sm:$0xff]
        %v221 = vld [vmem:[%s187 + $0x28] sm:$0xff]
        %v222 = vld [vmem:[%s187 + $0x30] sm:$0xff]
        %v223 = vld [vmem:[%s187 + $0x38] sm:$0xff]
        %v224 = vld [vmem:[%s187 + $0x40] sm:$0xff]
        %v225 = vld [vmem:[%s187 + $0x48] sm:$0xff]
        %v226 = vld [vmem:[%s187 + $0x50] sm:$0xff]
        %v227 = vld [vmem:[%s187 + $0x58] sm:$0xff]
        %v228 = vld [vmem:[%s187 + $0x60] sm:$0xff]
        %v229 = vld [vmem:[%s187 + $0x68] sm:$0xff]
        %v230 = vld [vmem:[%s187 + $0x70] sm:$0xff]
        %v231 = vld [vmem:[%s187 + $0x78] sm:$0xff]
        %v232 = vld [vmem:[%s187 + $0x80] sm:$0xff]
        %v233 = vld [vmem:[%s187 + $0x88] sm:$0xff]
        %v234 = vld [vmem:[%s187 + $0x90] sm:$0xff]
        %v235 = vld [vmem:[%s187 + $0x98] sm:$0xff]
        %v236 = vld [vmem:[%s187 + $0xa0] sm:$0xff]
        %v237 = vld [vmem:[%s187 + $0xa8] sm:$0xff]
        %v238 = vld [vmem:[%s187 + $0xb0] sm:$0xff]
        %v239 = vld [vmem:[%s187 + $0xb8] sm:$0xff]
        %v240 = vld [vmem:[%s187 + $0xc0] sm:$0xff]
        %v241 = vld [vmem:[%s187 + $0xc8] sm:$0xff]
        %v242 = vld [vmem:[%s187 + $0xd0] sm:$0xff]
        %v243 = vld [vmem:[%s187 + $0xd8] sm:$0xff]
        %v244 = vld [vmem:[%s187 + $0xe0] sm:$0xff]
        %v245 = vld [vmem:[%s187 + $0xe8] sm:$0xff]
        %v246 = vld [vmem:[%s187 + $0xf0] sm:$0xff]
        %v247 = vld [vmem:[%s187 + $0xf8] sm:$0xff]
        %v248 = vld [vmem:[%s187 + $0x100] sm:$0xff]
        %v249 = vld [vmem:[%s187 + $0x108] sm:$0xff]
        %v250 = vld [vmem:[%s187 + $0x110] sm:$0xff]
        %v251 = vld [vmem:[%s187 + $0x118] sm:$0xff]
        %v252 = vld [vmem:[%s187 + $0x120] sm:$0xff]
        %v253 = vld [vmem:[%s187 + $0x128] sm:$0xff]
        %v254 = vld [vmem:[%s187 + $0x130] sm:$0xff]
        %v255 = vld [vmem:[%s187 + $0x138] sm:$0xff]
        %v256 = vld [vmem:[%s187 + $0x140] sm:$0xff]
        %v257 = vld [vmem:[%s187 + $0x148] sm:$0xff]
        %v258 = vld [vmem:[%s187 + $0x150] sm:$0xff]
        %v259 = vld [vmem:[%s187 + $0x158] sm:$0xff]
        %v260 = vxor.u32 %v216, 2147483648
        %v261 = vxor.u32 %v217, 2147483648
        %v262 = vxor.u32 %v218, 2147483648
        %v263 = vxor.u32 %v219, 2147483648
        %v264 = vxor.u32 %v220, 2147483648
        %v265 = vxor.u32 %v221, 2147483648
        %v266 = vxor.u32 %v222, 2147483648
        %v267 = vxor.u32 %v223, 2147483648
        %v268 = vxor.u32 %v224, 2147483648
        %v269 = vxor.u32 %v225, 2147483648
        %v270 = vxor.u32 %v226, 2147483648
        %v271 = vxor.u32 %v227, 2147483648
        %v272 = vxor.u32 %v228, 2147483648
        %v273 = vxor.u32 %v229, 2147483648
        %v274 = vxor.u32 %v230, 2147483648
        %v275 = vxor.u32 %v231, 2147483648
        %v276 = vxor.u32 %v232, 2147483648
        %v277 = vxor.u32 %v233, 2147483648
        %v278 = vxor.u32 %v234, 2147483648
        %v279 = vxor.u32 %v235, 2147483648
        %v280 = vxor.u32 %v236, 2147483648
        %v281 = vxor.u32 %v237, 2147483648
        %v282 = vxor.u32 %v238, 2147483648
        %v283 = vxor.u32 %v239, 2147483648
        %v284 = vxor.u32 %v240, 2147483648
        %v285 = vxor.u32 %v241, 2147483648
        %v286 = vxor.u32 %v242, 2147483648
        %v287 = vxor.u32 %v243, 2147483648
        %v288 = vxor.u32 %v244, 2147483648
        %v289 = vxor.u32 %v245, 2147483648
        %v290 = vxor.u32 %v246, 2147483648
        %v291 = vxor.u32 %v247, 2147483648
        %v292 = vxor.u32 %v248, 2147483648
        %v293 = vxor.u32 %v249, 2147483648
        %v294 = vxor.u32 %v250, 2147483648
        %v295 = vxor.u32 %v251, 2147483648
        %v296 = vxor.u32 %v252, 2147483648
        %v297 = vxor.u32 %v253, 2147483648
        %v298 = vxor.u32 %v254, 2147483648
        %v299 = vxor.u32 %v255, 2147483648
        %v300 = vxor.u32 %v256, 2147483648
        %v301 = vxor.u32 %v257, 2147483648
        %v302 = vxor.u32 %v258, 2147483648
        %v303 = vxor.u32 %v259, 2147483648
        %v304 = vmul.f32 %v260, 1.442695
        %v305 = vpow.pop %v304
        %v306 = vmul.f32 %v261, 1.442695
        %v307 = vpow.pop %v306
        %v308 = vmul.f32 %v262, 1.442695
        %v309 = vpow.pop %v308
        %v310 = vmul.f32 %v263, 1.442695
        %v311 = vpow.pop %v310
        %v312 = vmul.f32 %v264, 1.442695
        %v313 = vpow.pop %v312
        %v314 = vmul.f32 %v265, 1.442695
        %v315 = vpow.pop %v314
        %v316 = vmul.f32 %v266, 1.442695
        %v317 = vpow.pop %v316
        %v318 = vmul.f32 %v267, 1.442695
        %v319 = vpow.pop %v318
        %v320 = vmul.f32 %v268, 1.442695
        %v321 = vpow.pop %v320
        %v322 = vmul.f32 %v269, 1.442695
        %v323 = vpow.pop %v322
        %v324 = vmul.f32 %v270, 1.442695
        %v325 = vpow.pop %v324
        %v326 = vmul.f32 %v271, 1.442695
        %v327 = vpow.pop %v326
        %v328 = vmul.f32 %v272, 1.442695
        %v329 = vpow.pop %v328
        %v330 = vmul.f32 %v273, 1.442695
        %v331 = vpow.pop %v330
        %v332 = vmul.f32 %v274, 1.442695
        %v333 = vpow.pop %v332
        %v334 = vmul.f32 %v275, 1.442695
        %v335 = vpow.pop %v334
        %v336 = vmul.f32 %v276, 1.442695
        %v337 = vpow.pop %v336
        %v338 = vmul.f32 %v277, 1.442695
        %v339 = vpow.pop %v338
        %v340 = vmul.f32 %v278, 1.442695
        %v341 = vpow.pop %v340
        %v342 = vmul.f32 %v279, 1.442695
        %v343 = vpow.pop %v342
        %v344 = vmul.f32 %v280, 1.442695
        %v345 = vpow.pop %v344
        %v346 = vmul.f32 %v281, 1.442695
        %v347 = vpow.pop %v346
        %v348 = vmul.f32 %v282, 1.442695
        %v349 = vpow.pop %v348
        %v350 = vmul.f32 %v283, 1.442695
        %v351 = vpow.pop %v350
        %v352 = vmul.f32 %v284, 1.442695
        %v353 = vpow.pop %v352
        %v354 = vmul.f32 %v285, 1.442695
        %v355 = vpow.pop %v354
        %v356 = vmul.f32 %v286, 1.442695
        %v357 = vpow.pop %v356
        %v358 = vmul.f32 %v287, 1.442695
        %v359 = vpow.pop %v358
        %v360 = vmul.f32 %v288, 1.442695
        %v361 = vpow.pop %v360
        %v362 = vmul.f32 %v289, 1.442695
        %v363 = vpow.pop %v362
        %v364 = vmul.f32 %v290, 1.442695
        %v365 = vpow.pop %v364
        %v366 = vmul.f32 %v291, 1.442695
        %v367 = vpow.pop %v366
        %v368 = vmul.f32 %v292, 1.442695
        %v369 = vpow.pop %v368
        %v370 = vmul.f32 %v293, 1.442695
        %v371 = vpow.pop %v370
        %v372 = vmul.f32 %v294, 1.442695
        %v373 = vpow.pop %v372
        %v374 = vmul.f32 %v295, 1.442695
        %v375 = vpow.pop %v374
        %v376 = vmul.f32 %v296, 1.442695
        %v377 = vpow.pop %v376
        %v378 = vmul.f32 %v297, 1.442695
        %v379 = vpow.pop %v378
        %v380 = vmul.f32 %v298, 1.442695
        %v381 = vpow.pop %v380
        %v382 = vmul.f32 %v299, 1.442695
        %v383 = vpow.pop %v382
        %v384 = vmul.f32 %v300, 1.442695
        %v385 = vpow.pop %v384
        %v386 = vmul.f32 %v301, 1.442695
        %v387 = vpow.pop %v386
        %v388 = vmul.f32 %v302, 1.442695
        %v389 = vpow.pop %v388
        %v390 = vmul.f32 %v303, 1.442695
        %v391 = vpow.pop %v390
        %v392 = vadd.f32 %v305, 1.0
        %v393 = vadd.f32 %v307, 1.0
        %v394 = vadd.f32 %v309, 1.0
        %v395 = vadd.f32 %v311, 1.0
        %v396 = vadd.f32 %v313, 1.0
        %v397 = vadd.f32 %v315, 1.0
        %v398 = vadd.f32 %v317, 1.0
        %v399 = vadd.f32 %v319, 1.0
        %v400 = vadd.f32 %v321, 1.0
        %v401 = vadd.f32 %v323, 1.0
        %v402 = vadd.f32 %v325, 1.0
        %v403 = vadd.f32 %v327, 1.0
        %v404 = vadd.f32 %v329, 1.0
        %v405 = vadd.f32 %v331, 1.0
        %v406 = vadd.f32 %v333, 1.0
        %v407 = vadd.f32 %v335, 1.0
        %v408 = vadd.f32 %v337, 1.0
        %v409 = vadd.f32 %v339, 1.0
        %v410 = vadd.f32 %v341, 1.0
        %v411 = vadd.f32 %v343, 1.0
        %v412 = vadd.f32 %v345, 1.0
        %v413 = vadd.f32 %v347, 1.0
        %v414 = vadd.f32 %v349, 1.0
        %v415 = vadd.f32 %v351, 1.0
        %v416 = vadd.f32 %v353, 1.0
        %v417 = vadd.f32 %v355, 1.0
        %v418 = vadd.f32 %v357, 1.0
        %v419 = vadd.f32 %v359, 1.0
        %v420 = vadd.f32 %v361, 1.0
        %v421 = vadd.f32 %v363, 1.0
        %v422 = vadd.f32 %v365, 1.0
        %v423 = vadd.f32 %v367, 1.0
        %v424 = vadd.f32 %v369, 1.0
        %v425 = vadd.f32 %v371, 1.0
        %v426 = vadd.f32 %v373, 1.0
        %v427 = vadd.f32 %v375, 1.0
        %v428 = vadd.f32 %v377, 1.0
        %v429 = vadd.f32 %v379, 1.0
        %v430 = vadd.f32 %v381, 1.0
        %v431 = vadd.f32 %v383, 1.0
        %v432 = vadd.f32 %v385, 1.0
        %v433 = vadd.f32 %v387, 1.0
        %v434 = vadd.f32 %v389, 1.0
        %v435 = vadd.f32 %v391, 1.0
        %v436 = vrcp.pop %v392
        %v437 = vmul.f32 %v392, %v436
        %v438 = vsub.f32 1.0, %v437
        %v439 = vmul.f32 %v436, %v438
        %v440 = vadd.f32 %v436, %v439
        %vm441 = vweird.f32 %v392
        %vm442 = vweird.f32 %v436
        %vm443 = vmor %vm441, %vm442
        %v444 = vsel %vm443, %v436, %v440
        %v445 = vand.u32 2147483647, %v392
        %vm446 = vcmp.eq.f32.partialorder %v445, 8.507059e+37
        %v447 = vand.u32 %v392, 2147483648
        %v448 = vor.u32 1.1754944e-38, %v447
        %v449 = vsel %vm446, %v448, %v444
        %v450 = vmul.f32 1.0, %v449
        %v451 = vrcp.pop %v393
        %v452 = vmul.f32 %v393, %v451
        %v453 = vsub.f32 1.0, %v452
        %v454 = vmul.f32 %v451, %v453
        %v455 = vadd.f32 %v451, %v454
        %vm456 = vweird.f32 %v393
        %vm457 = vweird.f32 %v451
        %vm458 = vmor %vm456, %vm457
        %v459 = vsel %vm458, %v451, %v455
        %v460 = vand.u32 2147483647, %v393
        %vm461 = vcmp.eq.f32.partialorder %v460, 8.507059e+37
        %v462 = vand.u32 %v393, 2147483648
        %v463 = vor.u32 1.1754944e-38, %v462
        %v464 = vsel %vm461, %v463, %v459
        %v465 = vmul.f32 1.0, %v464
        %v466 = vrcp.pop %v394
        %v467 = vmul.f32 %v394, %v466
        %v468 = vsub.f32 1.0, %v467
        %v469 = vmul.f32 %v466, %v468
        %v470 = vadd.f32 %v466, %v469
        %vm471 = vweird.f32 %v394
        %vm472 = vweird.f32 %v466
        %vm473 = vmor %vm471, %vm472
        %v474 = vsel %vm473, %v466, %v470
        %v475 = vand.u32 2147483647, %v394
        %vm476 = vcmp.eq.f32.partialorder %v475, 8.507059e+37
        %v477 = vand.u32 %v394, 2147483648
        %v478 = vor.u32 1.1754944e-38, %v477
        %v479 = vsel %vm476, %v478, %v474
        %v480 = vmul.f32 1.0, %v479
        %v481 = vrcp.pop %v395
        %v482 = vmul.f32 %v395, %v481
        %v483 = vsub.f32 1.0, %v482
        %v484 = vmul.f32 %v481, %v483
        %v485 = vadd.f32 %v481, %v484
        %vm486 = vweird.f32 %v395
        %vm487 = vweird.f32 %v481
        %vm488 = vmor %vm486, %vm487
        %v489 = vsel %vm488, %v481, %v485
        %v490 = vand.u32 2147483647, %v395
        %vm491 = vcmp.eq.f32.partialorder %v490, 8.507059e+37
        %v492 = vand.u32 %v395, 2147483648
        %v493 = vor.u32 1.1754944e-38, %v492
        %v494 = vsel %vm491, %v493, %v489
        %v495 = vmul.f32 1.0, %v494
        %v496 = vrcp.pop %v396
        %v497 = vmul.f32 %v396, %v496
        %v498 = vsub.f32 1.0, %v497
        %v499 = vmul.f32 %v496, %v498
        %v500 = vadd.f32 %v496, %v499
        %vm501 = vweird.f32 %v396
        %vm502 = vweird.f32 %v496
        %vm503 = vmor %vm501, %vm502
        %v504 = vsel %vm503, %v496, %v500
        %v505 = vand.u32 2147483647, %v396
        %vm506 = vcmp.eq.f32.partialorder %v505, 8.507059e+37
        %v507 = vand.u32 %v396, 2147483648
        %v508 = vor.u32 1.1754944e-38, %v507
        %v509 = vsel %vm506, %v508, %v504
        %v510 = vmul.f32 1.0, %v509
        %v511 = vrcp.pop %v397
        %v512 = vmul.f32 %v397, %v511
        %v513 = vsub.f32 1.0, %v512
        %v514 = vmul.f32 %v511, %v513
        %v515 = vadd.f32 %v511, %v514
        %vm516 = vweird.f32 %v397
        %vm517 = vweird.f32 %v511
        %vm518 = vmor %vm516, %vm517
        %v519 = vsel %vm518, %v511, %v515
        %v520 = vand.u32 2147483647, %v397
        %vm521 = vcmp.eq.f32.partialorder %v520, 8.507059e+37
        %v522 = vand.u32 %v397, 2147483648
        %v523 = vor.u32 1.1754944e-38, %v522
        %v524 = vsel %vm521, %v523, %v519
        %v525 = vmul.f32 1.0, %v524
        %v526 = vrcp.pop %v398
        %v527 = vmul.f32 %v398, %v526
        %v528 = vsub.f32 1.0, %v527
        %v529 = vmul.f32 %v526, %v528
        %v530 = vadd.f32 %v526, %v529
        %vm531 = vweird.f32 %v398
        %vm532 = vweird.f32 %v526
        %vm533 = vmor %vm531, %vm532
        %v534 = vsel %vm533, %v526, %v530
        %v535 = vand.u32 2147483647, %v398
        %vm536 = vcmp.eq.f32.partialorder %v535, 8.507059e+37
        %v537 = vand.u32 %v398, 2147483648
        %v538 = vor.u32 1.1754944e-38, %v537
        %v539 = vsel %vm536, %v538, %v534
        %v540 = vmul.f32 1.0, %v539
        %v541 = vrcp.pop %v399
        %v542 = vmul.f32 %v399, %v541
        %v543 = vsub.f32 1.0, %v542
        %v544 = vmul.f32 %v541, %v543
        %v545 = vadd.f32 %v541, %v544
        %vm546 = vweird.f32 %v399
        %vm547 = vweird.f32 %v541
        %vm548 = vmor %vm546, %vm547
        %v549 = vsel %vm548, %v541, %v545
        %v550 = vand.u32 2147483647, %v399
        %vm551 = vcmp.eq.f32.partialorder %v550, 8.507059e+37
        %v552 = vand.u32 %v399, 2147483648
        %v553 = vor.u32 1.1754944e-38, %v552
        %v554 = vsel %vm551, %v553, %v549
        %v555 = vmul.f32 1.0, %v554
        %v556 = vrcp.pop %v400
        %v557 = vmul.f32 %v400, %v556
        %v558 = vsub.f32 1.0, %v557
        %v559 = vmul.f32 %v556, %v558
        %v560 = vadd.f32 %v556, %v559
        %vm561 = vweird.f32 %v400
        %vm562 = vweird.f32 %v556
        %vm563 = vmor %vm561, %vm562
        %v564 = vsel %vm563, %v556, %v560
        %v565 = vand.u32 2147483647, %v400
        %vm566 = vcmp.eq.f32.partialorder %v565, 8.507059e+37
        %v567 = vand.u32 %v400, 2147483648
        %v568 = vor.u32 1.1754944e-38, %v567
        %v569 = vsel %vm566, %v568, %v564
        %v570 = vmul.f32 1.0, %v569
        %v571 = vrcp.pop %v401
        %v572 = vmul.f32 %v401, %v571
        %v573 = vsub.f32 1.0, %v572
        %v574 = vmul.f32 %v571, %v573
        %v575 = vadd.f32 %v571, %v574
        %vm576 = vweird.f32 %v401
        %vm577 = vweird.f32 %v571
        %vm578 = vmor %vm576, %vm577
        %v579 = vsel %vm578, %v571, %v575
        %v580 = vand.u32 2147483647, %v401
        %vm581 = vcmp.eq.f32.partialorder %v580, 8.507059e+37
        %v582 = vand.u32 %v401, 2147483648
        %v583 = vor.u32 1.1754944e-38, %v582
        %v584 = vsel %vm581, %v583, %v579
        %v585 = vmul.f32 1.0, %v584
        %v586 = vrcp.pop %v402
        %v587 = vmul.f32 %v402, %v586
        %v588 = vsub.f32 1.0, %v587
        %v589 = vmul.f32 %v586, %v588
        %v590 = vadd.f32 %v586, %v589
        %vm591 = vweird.f32 %v402
        %vm592 = vweird.f32 %v586
        %vm593 = vmor %vm591, %vm592
        %v594 = vsel %vm593, %v586, %v590
        %v595 = vand.u32 2147483647, %v402
        %vm596 = vcmp.eq.f32.partialorder %v595, 8.507059e+37
        %v597 = vand.u32 %v402, 2147483648
        %v598 = vor.u32 1.1754944e-38, %v597
        %v599 = vsel %vm596, %v598, %v594
        %v600 = vmul.f32 1.0, %v599
        %v601 = vrcp.pop %v403
        %v602 = vmul.f32 %v403, %v601
        %v603 = vsub.f32 1.0, %v602
        %v604 = vmul.f32 %v601, %v603
        %v605 = vadd.f32 %v601, %v604
        %vm606 = vweird.f32 %v403
        %vm607 = vweird.f32 %v601
        %vm608 = vmor %vm606, %vm607
        %v609 = vsel %vm608, %v601, %v605
        %v610 = vand.u32 2147483647, %v403
        %vm611 = vcmp.eq.f32.partialorder %v610, 8.507059e+37
        %v612 = vand.u32 %v403, 2147483648
        %v613 = vor.u32 1.1754944e-38, %v612
        %v614 = vsel %vm611, %v613, %v609
        %v615 = vmul.f32 1.0, %v614
        %v616 = vrcp.pop %v404
        %v617 = vmul.f32 %v404, %v616
        %v618 = vsub.f32 1.0, %v617
        %v619 = vmul.f32 %v616, %v618
        %v620 = vadd.f32 %v616, %v619
        %vm621 = vweird.f32 %v404
        %vm622 = vweird.f32 %v616
        %vm623 = vmor %vm621, %vm622
        %v624 = vsel %vm623, %v616, %v620
        %v625 = vand.u32 2147483647, %v404
        %vm626 = vcmp.eq.f32.partialorder %v625, 8.507059e+37
        %v627 = vand.u32 %v404, 2147483648
        %v628 = vor.u32 1.1754944e-38, %v627
        %v629 = vsel %vm626, %v628, %v624
        %v630 = vmul.f32 1.0, %v629
        %v631 = vrcp.pop %v405
        %v632 = vmul.f32 %v405, %v631
        %v633 = vsub.f32 1.0, %v632
        %v634 = vmul.f32 %v631, %v633
        %v635 = vadd.f32 %v631, %v634
        %vm636 = vweird.f32 %v405
        %vm637 = vweird.f32 %v631
        %vm638 = vmor %vm636, %vm637
        %v639 = vsel %vm638, %v631, %v635
        %v640 = vand.u32 2147483647, %v405
        %vm641 = vcmp.eq.f32.partialorder %v640, 8.507059e+37
        %v642 = vand.u32 %v405, 2147483648
        %v643 = vor.u32 1.1754944e-38, %v642
        %v644 = vsel %vm641, %v643, %v639
        %v645 = vmul.f32 1.0, %v644
        %v646 = vrcp.pop %v406
        %v647 = vmul.f32 %v406, %v646
        %v648 = vsub.f32 1.0, %v647
        %v649 = vmul.f32 %v646, %v648
        %v650 = vadd.f32 %v646, %v649
        %vm651 = vweird.f32 %v406
        %vm652 = vweird.f32 %v646
        %vm653 = vmor %vm651, %vm652
        %v654 = vsel %vm653, %v646, %v650
        %v655 = vand.u32 2147483647, %v406
        %vm656 = vcmp.eq.f32.partialorder %v655, 8.507059e+37
        %v657 = vand.u32 %v406, 2147483648
        %v658 = vor.u32 1.1754944e-38, %v657
        %v659 = vsel %vm656, %v658, %v654
        %v660 = vmul.f32 1.0, %v659
        %v661 = vrcp.pop %v407
        %v662 = vmul.f32 %v407, %v661
        %v663 = vsub.f32 1.0, %v662
        %v664 = vmul.f32 %v661, %v663
        %v665 = vadd.f32 %v661, %v664
        %vm666 = vweird.f32 %v407
        %vm667 = vweird.f32 %v661
        %vm668 = vmor %vm666, %vm667
        %v669 = vsel %vm668, %v661, %v665
        %v670 = vand.u32 2147483647, %v407
        %vm671 = vcmp.eq.f32.partialorder %v670, 8.507059e+37
        %v672 = vand.u32 %v407, 2147483648
        %v673 = vor.u32 1.1754944e-38, %v672
        %v674 = vsel %vm671, %v673, %v669
        %v675 = vmul.f32 1.0, %v674
        %v676 = vrcp.pop %v408
        %v677 = vmul.f32 %v408, %v676
        %v678 = vsub.f32 1.0, %v677
        %v679 = vmul.f32 %v676, %v678
        %v680 = vadd.f32 %v676, %v679
        %vm681 = vweird.f32 %v408
        %vm682 = vweird.f32 %v676
        %vm683 = vmor %vm681, %vm682
        %v684 = vsel %vm683, %v676, %v680
        %v685 = vand.u32 2147483647, %v408
        %vm686 = vcmp.eq.f32.partialorder %v685, 8.507059e+37
        %v687 = vand.u32 %v408, 2147483648
        %v688 = vor.u32 1.1754944e-38, %v687
        %v689 = vsel %vm686, %v688, %v684
        %v690 = vmul.f32 1.0, %v689
        %v691 = vrcp.pop %v409
        %v692 = vmul.f32 %v409, %v691
        %v693 = vsub.f32 1.0, %v692
        %v694 = vmul.f32 %v691, %v693
        %v695 = vadd.f32 %v691, %v694
        %vm696 = vweird.f32 %v409
        %vm697 = vweird.f32 %v691
        %vm698 = vmor %vm696, %vm697
        %v699 = vsel %vm698, %v691, %v695
        %v700 = vand.u32 2147483647, %v409
        %vm701 = vcmp.eq.f32.partialorder %v700, 8.507059e+37
        %v702 = vand.u32 %v409, 2147483648
        %v703 = vor.u32 1.1754944e-38, %v702
        %v704 = vsel %vm701, %v703, %v699
        %v705 = vmul.f32 1.0, %v704
        %v706 = vrcp.pop %v410
        %v707 = vmul.f32 %v410, %v706
        %v708 = vsub.f32 1.0, %v707
        %v709 = vmul.f32 %v706, %v708
        %v710 = vadd.f32 %v706, %v709
        %vm711 = vweird.f32 %v410
        %vm712 = vweird.f32 %v706
        %vm713 = vmor %vm711, %vm712
        %v714 = vsel %vm713, %v706, %v710
        %v715 = vand.u32 2147483647, %v410
        %vm716 = vcmp.eq.f32.partialorder %v715, 8.507059e+37
        %v717 = vand.u32 %v410, 2147483648
        %v718 = vor.u32 1.1754944e-38, %v717
        %v719 = vsel %vm716, %v718, %v714
        %v720 = vmul.f32 1.0, %v719
        %v721 = vrcp.pop %v411
        %v722 = vmul.f32 %v411, %v721
        %v723 = vsub.f32 1.0, %v722
        %v724 = vmul.f32 %v721, %v723
        %v725 = vadd.f32 %v721, %v724
        %vm726 = vweird.f32 %v411
        %vm727 = vweird.f32 %v721
        %vm728 = vmor %vm726, %vm727
        %v729 = vsel %vm728, %v721, %v725
        %v730 = vand.u32 2147483647, %v411
        %vm731 = vcmp.eq.f32.partialorder %v730, 8.507059e+37
        %v732 = vand.u32 %v411, 2147483648
        %v733 = vor.u32 1.1754944e-38, %v732
        %v734 = vsel %vm731, %v733, %v729
        %v735 = vmul.f32 1.0, %v734
        %v736 = vrcp.pop %v412
        %v737 = vmul.f32 %v412, %v736
        %v738 = vsub.f32 1.0, %v737
        %v739 = vmul.f32 %v736, %v738
        %v740 = vadd.f32 %v736, %v739
        %vm741 = vweird.f32 %v412
        %vm742 = vweird.f32 %v736
        %vm743 = vmor %vm741, %vm742
        %v744 = vsel %vm743, %v736, %v740
        %v745 = vand.u32 2147483647, %v412
        %vm746 = vcmp.eq.f32.partialorder %v745, 8.507059e+37
        %v747 = vand.u32 %v412, 2147483648
        %v748 = vor.u32 1.1754944e-38, %v747
        %v749 = vsel %vm746, %v748, %v744
        %v750 = vmul.f32 1.0, %v749
        %v751 = vrcp.pop %v413
        %v752 = vmul.f32 %v413, %v751
        %v753 = vsub.f32 1.0, %v752
        %v754 = vmul.f32 %v751, %v753
        %v755 = vadd.f32 %v751, %v754
        %vm756 = vweird.f32 %v413
        %vm757 = vweird.f32 %v751
        %vm758 = vmor %vm756, %vm757
        %v759 = vsel %vm758, %v751, %v755
        %v760 = vand.u32 2147483647, %v413
        %vm761 = vcmp.eq.f32.partialorder %v760, 8.507059e+37
        %v762 = vand.u32 %v413, 2147483648
        %v763 = vor.u32 1.1754944e-38, %v762
        %v764 = vsel %vm761, %v763, %v759
        %v765 = vmul.f32 1.0, %v764
        %v766 = vrcp.pop %v414
        %v767 = vmul.f32 %v414, %v766
        %v768 = vsub.f32 1.0, %v767
        %v769 = vmul.f32 %v766, %v768
        %v770 = vadd.f32 %v766, %v769
        %vm771 = vweird.f32 %v414
        %vm772 = vweird.f32 %v766
        %vm773 = vmor %vm771, %vm772
        %v774 = vsel %vm773, %v766, %v770
        %v775 = vand.u32 2147483647, %v414
        %vm776 = vcmp.eq.f32.partialorder %v775, 8.507059e+37
        %v777 = vand.u32 %v414, 2147483648
        %v778 = vor.u32 1.1754944e-38, %v777
        %v779 = vsel %vm776, %v778, %v774
        %v780 = vmul.f32 1.0, %v779
        %v781 = vrcp.pop %v415
        %v782 = vmul.f32 %v415, %v781
        %v783 = vsub.f32 1.0, %v782
        %v784 = vmul.f32 %v781, %v783
        %v785 = vadd.f32 %v781, %v784
        %vm786 = vweird.f32 %v415
        %vm787 = vweird.f32 %v781
        %vm788 = vmor %vm786, %vm787
        %v789 = vsel %vm788, %v781, %v785
        %v790 = vand.u32 2147483647, %v415
        %vm791 = vcmp.eq.f32.partialorder %v790, 8.507059e+37
        %v792 = vand.u32 %v415, 2147483648
        %v793 = vor.u32 1.1754944e-38, %v792
        %v794 = vsel %vm791, %v793, %v789
        %v795 = vmul.f32 1.0, %v794
        %v796 = vrcp.pop %v416
        %v797 = vmul.f32 %v416, %v796
        %v798 = vsub.f32 1.0, %v797
        %v799 = vmul.f32 %v796, %v798
        %v800 = vadd.f32 %v796, %v799
        %vm801 = vweird.f32 %v416
        %vm802 = vweird.f32 %v796
        %vm803 = vmor %vm801, %vm802
        %v804 = vsel %vm803, %v796, %v800
        %v805 = vand.u32 2147483647, %v416
        %vm806 = vcmp.eq.f32.partialorder %v805, 8.507059e+37
        %v807 = vand.u32 %v416, 2147483648
        %v808 = vor.u32 1.1754944e-38, %v807
        %v809 = vsel %vm806, %v808, %v804
        %v810 = vmul.f32 1.0, %v809
        %v811 = vrcp.pop %v417
        %v812 = vmul.f32 %v417, %v811
        %v813 = vsub.f32 1.0, %v812
        %v814 = vmul.f32 %v811, %v813
        %v815 = vadd.f32 %v811, %v814
        %vm816 = vweird.f32 %v417
        %vm817 = vweird.f32 %v811
        %vm818 = vmor %vm816, %vm817
        %v819 = vsel %vm818, %v811, %v815
        %v820 = vand.u32 2147483647, %v417
        %vm821 = vcmp.eq.f32.partialorder %v820, 8.507059e+37
        %v822 = vand.u32 %v417, 2147483648
        %v823 = vor.u32 1.1754944e-38, %v822
        %v824 = vsel %vm821, %v823, %v819
        %v825 = vmul.f32 1.0, %v824
        %v826 = vrcp.pop %v418
        %v827 = vmul.f32 %v418, %v826
        %v828 = vsub.f32 1.0, %v827
        %v829 = vmul.f32 %v826, %v828
        %v830 = vadd.f32 %v826, %v829
        %vm831 = vweird.f32 %v418
        %vm832 = vweird.f32 %v826
        %vm833 = vmor %vm831, %vm832
        %v834 = vsel %vm833, %v826, %v830
        %v835 = vand.u32 2147483647, %v418
        %vm836 = vcmp.eq.f32.partialorder %v835, 8.507059e+37
        %v837 = vand.u32 %v418, 2147483648
        %v838 = vor.u32 1.1754944e-38, %v837
        %v839 = vsel %vm836, %v838, %v834
        %v840 = vmul.f32 1.0, %v839
        %v841 = vrcp.pop %v419
        %v842 = vmul.f32 %v419, %v841
        %v843 = vsub.f32 1.0, %v842
        %v844 = vmul.f32 %v841, %v843
        %v845 = vadd.f32 %v841, %v844
        %vm846 = vweird.f32 %v419
        %vm847 = vweird.f32 %v841
        %vm848 = vmor %vm846, %vm847
        %v849 = vsel %vm848, %v841, %v845
        %v850 = vand.u32 2147483647, %v419
        %vm851 = vcmp.eq.f32.partialorder %v850, 8.507059e+37
        %v852 = vand.u32 %v419, 2147483648
        %v853 = vor.u32 1.1754944e-38, %v852
        %v854 = vsel %vm851, %v853, %v849
        %v855 = vmul.f32 1.0, %v854
        %v856 = vrcp.pop %v420
        %v857 = vmul.f32 %v420, %v856
        %v858 = vsub.f32 1.0, %v857
        %v859 = vmul.f32 %v856, %v858
        %v860 = vadd.f32 %v856, %v859
        %vm861 = vweird.f32 %v420
        %vm862 = vweird.f32 %v856
        %vm863 = vmor %vm861, %vm862
        %v864 = vsel %vm863, %v856, %v860
        %v865 = vand.u32 2147483647, %v420
        %vm866 = vcmp.eq.f32.partialorder %v865, 8.507059e+37
        %v867 = vand.u32 %v420, 2147483648
        %v868 = vor.u32 1.1754944e-38, %v867
        %v869 = vsel %vm866, %v868, %v864
        %v870 = vmul.f32 1.0, %v869
        %v871 = vrcp.pop %v421
        %v872 = vmul.f32 %v421, %v871
        %v873 = vsub.f32 1.0, %v872
        %v874 = vmul.f32 %v871, %v873
        %v875 = vadd.f32 %v871, %v874
        %vm876 = vweird.f32 %v421
        %vm877 = vweird.f32 %v871
        %vm878 = vmor %vm876, %vm877
        %v879 = vsel %vm878, %v871, %v875
        %v880 = vand.u32 2147483647, %v421
        %vm881 = vcmp.eq.f32.partialorder %v880, 8.507059e+37
        %v882 = vand.u32 %v421, 2147483648
        %v883 = vor.u32 1.1754944e-38, %v882
        %v884 = vsel %vm881, %v883, %v879
        %v885 = vmul.f32 1.0, %v884
        %v886 = vrcp.pop %v422
        %v887 = vmul.f32 %v422, %v886
        %v888 = vsub.f32 1.0, %v887
        %v889 = vmul.f32 %v886, %v888
        %v890 = vadd.f32 %v886, %v889
        %vm891 = vweird.f32 %v422
        %vm892 = vweird.f32 %v886
        %vm893 = vmor %vm891, %vm892
        %v894 = vsel %vm893, %v886, %v890
        %v895 = vand.u32 2147483647, %v422
        %vm896 = vcmp.eq.f32.partialorder %v895, 8.507059e+37
        %v897 = vand.u32 %v422, 2147483648
        %v898 = vor.u32 1.1754944e-38, %v897
        %v899 = vsel %vm896, %v898, %v894
        %v900 = vmul.f32 1.0, %v899
        %v901 = vrcp.pop %v423
        %v902 = vmul.f32 %v423, %v901
        %v903 = vsub.f32 1.0, %v902
        %v904 = vmul.f32 %v901, %v903
        %v905 = vadd.f32 %v901, %v904
        %vm906 = vweird.f32 %v423
        %vm907 = vweird.f32 %v901
        %vm908 = vmor %vm906, %vm907
        %v909 = vsel %vm908, %v901, %v905
        %v910 = vand.u32 2147483647, %v423
        %vm911 = vcmp.eq.f32.partialorder %v910, 8.507059e+37
        %v912 = vand.u32 %v423, 2147483648
        %v913 = vor.u32 1.1754944e-38, %v912
        %v914 = vsel %vm911, %v913, %v909
        %v915 = vmul.f32 1.0, %v914
        %v916 = vrcp.pop %v424
        %v917 = vmul.f32 %v424, %v916
        %v918 = vsub.f32 1.0, %v917
        %v919 = vmul.f32 %v916, %v918
        %v920 = vadd.f32 %v916, %v919
        %vm921 = vweird.f32 %v424
        %vm922 = vweird.f32 %v916
        %vm923 = vmor %vm921, %vm922
        %v924 = vsel %vm923, %v916, %v920
        %v925 = vand.u32 2147483647, %v424
        %vm926 = vcmp.eq.f32.partialorder %v925, 8.507059e+37
        %v927 = vand.u32 %v424, 2147483648
        %v928 = vor.u32 1.1754944e-38, %v927
        %v929 = vsel %vm926, %v928, %v924
        %v930 = vmul.f32 1.0, %v929
        %v931 = vrcp.pop %v425
        %v932 = vmul.f32 %v425, %v931
        %v933 = vsub.f32 1.0, %v932
        %v934 = vmul.f32 %v931, %v933
        %v935 = vadd.f32 %v931, %v934
        %vm936 = vweird.f32 %v425
        %vm937 = vweird.f32 %v931
        %vm938 = vmor %vm936, %vm937
        %v939 = vsel %vm938, %v931, %v935
        %v940 = vand.u32 2147483647, %v425
        %vm941 = vcmp.eq.f32.partialorder %v940, 8.507059e+37
        %v942 = vand.u32 %v425, 2147483648
        %v943 = vor.u32 1.1754944e-38, %v942
        %v944 = vsel %vm941, %v943, %v939
        %v945 = vmul.f32 1.0, %v944
        %v946 = vrcp.pop %v426
        %v947 = vmul.f32 %v426, %v946
        %v948 = vsub.f32 1.0, %v947
        %v949 = vmul.f32 %v946, %v948
        %v950 = vadd.f32 %v946, %v949
        %vm951 = vweird.f32 %v426
        %vm952 = vweird.f32 %v946
        %vm953 = vmor %vm951, %vm952
        %v954 = vsel %vm953, %v946, %v950
        %v955 = vand.u32 2147483647, %v426
        %vm956 = vcmp.eq.f32.partialorder %v955, 8.507059e+37
        %v957 = vand.u32 %v426, 2147483648
        %v958 = vor.u32 1.1754944e-38, %v957
        %v959 = vsel %vm956, %v958, %v954
        %v960 = vmul.f32 1.0, %v959
        %v961 = vrcp.pop %v427
        %v962 = vmul.f32 %v427, %v961
        %v963 = vsub.f32 1.0, %v962
        %v964 = vmul.f32 %v961, %v963
        %v965 = vadd.f32 %v961, %v964
        %vm966 = vweird.f32 %v427
        %vm967 = vweird.f32 %v961
        %vm968 = vmor %vm966, %vm967
        %v969 = vsel %vm968, %v961, %v965
        %v970 = vand.u32 2147483647, %v427
        %vm971 = vcmp.eq.f32.partialorder %v970, 8.507059e+37
        %v972 = vand.u32 %v427, 2147483648
        %v973 = vor.u32 1.1754944e-38, %v972
        %v974 = vsel %vm971, %v973, %v969
        %v975 = vmul.f32 1.0, %v974
        %v976 = vrcp.pop %v428
        %v977 = vmul.f32 %v428, %v976
        %v978 = vsub.f32 1.0, %v977
        %v979 = vmul.f32 %v976, %v978
        %v980 = vadd.f32 %v976, %v979
        %vm981 = vweird.f32 %v428
        %vm982 = vweird.f32 %v976
        %vm983 = vmor %vm981, %vm982
        %v984 = vsel %vm983, %v976, %v980
        %v985 = vand.u32 2147483647, %v428
        %vm986 = vcmp.eq.f32.partialorder %v985, 8.507059e+37
        %v987 = vand.u32 %v428, 2147483648
        %v988 = vor.u32 1.1754944e-38, %v987
        %v989 = vsel %vm986, %v988, %v984
        %v990 = vmul.f32 1.0, %v989
        %v991 = vrcp.pop %v429
        %v992 = vmul.f32 %v429, %v991
        %v993 = vsub.f32 1.0, %v992
        %v994 = vmul.f32 %v991, %v993
        %v995 = vadd.f32 %v991, %v994
        %vm996 = vweird.f32 %v429
        %vm997 = vweird.f32 %v991
        %vm998 = vmor %vm996, %vm997
        %v999 = vsel %vm998, %v991, %v995
        %v1000 = vand.u32 2147483647, %v429
        %vm1001 = vcmp.eq.f32.partialorder %v1000, 8.507059e+37
        %v1002 = vand.u32 %v429, 2147483648
        %v1003 = vor.u32 1.1754944e-38, %v1002
        %v1004 = vsel %vm1001, %v1003, %v999
        %v1005 = vmul.f32 1.0, %v1004
        %v1006 = vrcp.pop %v430
        %v1007 = vmul.f32 %v430, %v1006
        %v1008 = vsub.f32 1.0, %v1007
        %v1009 = vmul.f32 %v1006, %v1008
        %v1010 = vadd.f32 %v1006, %v1009
        %vm1011 = vweird.f32 %v430
        %vm1012 = vweird.f32 %v1006
        %vm1013 = vmor %vm1011, %vm1012
        %v1014 = vsel %vm1013, %v1006, %v1010
        %v1015 = vand.u32 2147483647, %v430
        %vm1016 = vcmp.eq.f32.partialorder %v1015, 8.507059e+37
        %v1017 = vand.u32 %v430, 2147483648
        %v1018 = vor.u32 1.1754944e-38, %v1017
        %v1019 = vsel %vm1016, %v1018, %v1014
        %v1020 = vmul.f32 1.0, %v1019
        %v1021 = vrcp.pop %v431
        %v1022 = vmul.f32 %v431, %v1021
        %v1023 = vsub.f32 1.0, %v1022
        %v1024 = vmul.f32 %v1021, %v1023
        %v1025 = vadd.f32 %v1021, %v1024
        %vm1026 = vweird.f32 %v431
        %vm1027 = vweird.f32 %v1021
        %vm1028 = vmor %vm1026, %vm1027
        %v1029 = vsel %vm1028, %v1021, %v1025
        %v1030 = vand.u32 2147483647, %v431
        %vm1031 = vcmp.eq.f32.partialorder %v1030, 8.507059e+37
        %v1032 = vand.u32 %v431, 2147483648
        %v1033 = vor.u32 1.1754944e-38, %v1032
        %v1034 = vsel %vm1031, %v1033, %v1029
        %v1035 = vmul.f32 1.0, %v1034
        %v1036 = vrcp.pop %v432
        %v1037 = vmul.f32 %v432, %v1036
        %v1038 = vsub.f32 1.0, %v1037
        %v1039 = vmul.f32 %v1036, %v1038
        %v1040 = vadd.f32 %v1036, %v1039
        %vm1041 = vweird.f32 %v432
        %vm1042 = vweird.f32 %v1036
        %vm1043 = vmor %vm1041, %vm1042
        %v1044 = vsel %vm1043, %v1036, %v1040
        %v1045 = vand.u32 2147483647, %v432
        %vm1046 = vcmp.eq.f32.partialorder %v1045, 8.507059e+37
        %v1047 = vand.u32 %v432, 2147483648
        %v1048 = vor.u32 1.1754944e-38, %v1047
        %v1049 = vsel %vm1046, %v1048, %v1044
        %v1050 = vmul.f32 1.0, %v1049
        %v1051 = vrcp.pop %v433
        %v1052 = vmul.f32 %v433, %v1051
        %v1053 = vsub.f32 1.0, %v1052
        %v1054 = vmul.f32 %v1051, %v1053
        %v1055 = vadd.f32 %v1051, %v1054
        %vm1056 = vweird.f32 %v433
        %vm1057 = vweird.f32 %v1051
        %vm1058 = vmor %vm1056, %vm1057
        %v1059 = vsel %vm1058, %v1051, %v1055
        %v1060 = vand.u32 2147483647, %v433
        %vm1061 = vcmp.eq.f32.partialorder %v1060, 8.507059e+37
        %v1062 = vand.u32 %v433, 2147483648
        %v1063 = vor.u32 1.1754944e-38, %v1062
        %v1064 = vsel %vm1061, %v1063, %v1059
        %v1065 = vmul.f32 1.0, %v1064
        %v1066 = vrcp.pop %v434
        %v1067 = vmul.f32 %v434, %v1066
        %v1068 = vsub.f32 1.0, %v1067
        %v1069 = vmul.f32 %v1066, %v1068
        %v1070 = vadd.f32 %v1066, %v1069
        %vm1071 = vweird.f32 %v434
        %vm1072 = vweird.f32 %v1066
        %vm1073 = vmor %vm1071, %vm1072
        %v1074 = vsel %vm1073, %v1066, %v1070
        %v1075 = vand.u32 2147483647, %v434
        %vm1076 = vcmp.eq.f32.partialorder %v1075, 8.507059e+37
        %v1077 = vand.u32 %v434, 2147483648
        %v1078 = vor.u32 1.1754944e-38, %v1077
        %v1079 = vsel %vm1076, %v1078, %v1074
        %v1080 = vmul.f32 1.0, %v1079
        %v1081 = vrcp.pop %v435
        %v1082 = vmul.f32 %v435, %v1081
        %v1083 = vsub.f32 1.0, %v1082
        %v1084 = vmul.f32 %v1081, %v1083
        %v1085 = vadd.f32 %v1081, %v1084
        %vm1086 = vweird.f32 %v435
        %vm1087 = vweird.f32 %v1081
        %vm1088 = vmor %vm1086, %vm1087
        %v1089 = vsel %vm1088, %v1081, %v1085
        %v1090 = vand.u32 2147483647, %v435
        %vm1091 = vcmp.eq.f32.partialorder %v1090, 8.507059e+37
        %v1092 = vand.u32 %v435, 2147483648
        %v1093 = vor.u32 1.1754944e-38, %v1092
        %v1094 = vsel %vm1091, %v1093, %v1089
        %v1095 = vmul.f32 1.0, %v1094
        %v1096 = vld [vmem:[%s203] sm:$0xff]
        %v1097 = vld [vmem:[%s203 + $0x8] sm:$0xff]
        %v1098 = vld [vmem:[%s203 + $0x10] sm:$0xff]
        %v1099 = vld [vmem:[%s203 + $0x18] sm:$0xff]
        %v1100 = vld [vmem:[%s203 + $0x20] sm:$0xff]
        %v1101 = vld [vmem:[%s203 + $0x28] sm:$0xff]
        %v1102 = vld [vmem:[%s203 + $0x30] sm:$0xff]
        %v1103 = vld [vmem:[%s203 + $0x38] sm:$0xff]
        %v1104 = vld [vmem:[%s203 + $0x40] sm:$0xff]
        %v1105 = vld [vmem:[%s203 + $0x48] sm:$0xff]
        %v1106 = vld [vmem:[%s203 + $0x50] sm:$0xff]
        %v1107 = vld [vmem:[%s203 + $0x58] sm:$0xff]
        %v1108 = vld [vmem:[%s203 + $0x60] sm:$0xff]
        %v1109 = vld [vmem:[%s203 + $0x68] sm:$0xff]
        %v1110 = vld [vmem:[%s203 + $0x70] sm:$0xff]
        %v1111 = vld [vmem:[%s203 + $0x78] sm:$0xff]
        %v1112 = vld [vmem:[%s203 + $0x80] sm:$0xff]
        %v1113 = vld [vmem:[%s203 + $0x88] sm:$0xff]
        %v1114 = vld [vmem:[%s203 + $0x90] sm:$0xff]
        %v1115 = vld [vmem:[%s203 + $0x98] sm:$0xff]
        %v1116 = vld [vmem:[%s203 + $0xa0] sm:$0xff]
        %v1117 = vld [vmem:[%s203 + $0xa8] sm:$0xff]
        %v1118 = vld [vmem:[%s203 + $0xb0] sm:$0xff]
        %v1119 = vld [vmem:[%s203 + $0xb8] sm:$0xff]
        %v1120 = vld [vmem:[%s203 + $0xc0] sm:$0xff]
        %v1121 = vld [vmem:[%s203 + $0xc8] sm:$0xff]
        %v1122 = vld [vmem:[%s203 + $0xd0] sm:$0xff]
        %v1123 = vld [vmem:[%s203 + $0xd8] sm:$0xff]
        %v1124 = vld [vmem:[%s203 + $0xe0] sm:$0xff]
        %v1125 = vld [vmem:[%s203 + $0xe8] sm:$0xff]
        %v1126 = vld [vmem:[%s203 + $0xf0] sm:$0xff]
        %v1127 = vld [vmem:[%s203 + $0xf8] sm:$0xff]
        %v1128 = vld [vmem:[%s203 + $0x100] sm:$0xff]
        %v1129 = vld [vmem:[%s203 + $0x108] sm:$0xff]
        %v1130 = vld [vmem:[%s203 + $0x110] sm:$0xff]
        %v1131 = vld [vmem:[%s203 + $0x118] sm:$0xff]
        %v1132 = vld [vmem:[%s203 + $0x120] sm:$0xff]
        %v1133 = vld [vmem:[%s203 + $0x128] sm:$0xff]
        %v1134 = vld [vmem:[%s203 + $0x130] sm:$0xff]
        %v1135 = vld [vmem:[%s203 + $0x138] sm:$0xff]
        %v1136 = vld [vmem:[%s203 + $0x140] sm:$0xff]
        %v1137 = vld [vmem:[%s203 + $0x148] sm:$0xff]
        %v1138 = vld [vmem:[%s203 + $0x150] sm:$0xff]
        %v1139 = vld [vmem:[%s203 + $0x158] sm:$0xff]
        %v1140 = vld [vmem:[%s203 + $0x160] sm:$0xff]
        %v1141 = vld [vmem:[%s203 + $0x168] sm:$0xff]
        %v1142 = vld [vmem:[%s203 + $0x170] sm:$0xff]
        %v1143 = vld [vmem:[%s203 + $0x178] sm:$0xff]
        %v1144 = vld [vmem:[%s203 + $0x180] sm:$0xff]
        %v1145 = vld [vmem:[%s203 + $0x188] sm:$0xff]
        %v1146 = vld [vmem:[%s203 + $0x190] sm:$0xff]
        %v1147 = vld [vmem:[%s203 + $0x198] sm:$0xff]
        %v1148 = vld [vmem:[%s203 + $0x1a0] sm:$0xff]
        %v1149 = vld [vmem:[%s203 + $0x1a8] sm:$0xff]
        %v1150 = vld [vmem:[%s203 + $0x1b0] sm:$0xff]
        %v1151 = vld [vmem:[%s203 + $0x1b8] sm:$0xff]
        %v1152 = vld [vmem:[%s203 + $0x1c0] sm:$0xff]
        %v1153 = vld [vmem:[%s203 + $0x1c8] sm:$0xff]
        %v1154 = vld [vmem:[%s203 + $0x1d0] sm:$0xff]
        %v1155 = vld [vmem:[%s203 + $0x1d8] sm:$0xff]
        %v1156 = vld [vmem:[%s203 + $0x1e0] sm:$0xff]
        %v1157 = vld [vmem:[%s203 + $0x1e8] sm:$0xff]
        %v1158 = vld [vmem:[%s203 + $0x1f0] sm:$0xff]
        %v1159 = vld [vmem:[%s203 + $0x1f8] sm:$0xff]
        %v1160 = vld [vmem:[%s203 + $0x200] sm:$0xff]
        %v1161 = vld [vmem:[%s203 + $0x208] sm:$0xff]
        %v1162 = vld [vmem:[%s203 + $0x210] sm:$0xff]
        %v1163 = vld [vmem:[%s203 + $0x218] sm:$0xff]
        %v1164 = vld [vmem:[%s203 + $0x220] sm:$0xff]
        %v1165 = vld [vmem:[%s203 + $0x228] sm:$0xff]
        %v1166 = vld [vmem:[%s203 + $0x230] sm:$0xff]
        %v1167 = vld [vmem:[%s203 + $0x238] sm:$0xff]
        %v1168 = vld [vmem:[%s203 + $0x240] sm:$0xff]
        %v1169 = vld [vmem:[%s203 + $0x248] sm:$0xff]
        %v1170 = vld [vmem:[%s203 + $0x250] sm:$0xff]
        %v1171 = vld [vmem:[%s203 + $0x258] sm:$0xff]
        %v1172 = vld [vmem:[%s203 + $0x260] sm:$0xff]
        %v1173 = vld [vmem:[%s203 + $0x268] sm:$0xff]
        %v1174 = vld [vmem:[%s203 + $0x270] sm:$0xff]
        %v1175 = vld [vmem:[%s203 + $0x278] sm:$0xff]
        %v1176 = vld [vmem:[%s203 + $0x280] sm:$0xff]
        %v1177 = vld [vmem:[%s203 + $0x288] sm:$0xff]
        %v1178 = vld [vmem:[%s203 + $0x290] sm:$0xff]
        %v1179 = vld [vmem:[%s203 + $0x298] sm:$0xff]
        %v1180 = vld [vmem:[%s203 + $0x2a0] sm:$0xff]
        %v1181 = vld [vmem:[%s203 + $0x2a8] sm:$0xff]
        %v1182 = vld [vmem:[%s203 + $0x2b0] sm:$0xff]
        %v1183 = vld [vmem:[%s203 + $0x2b8] sm:$0xff]
        %v1184 = vld [vmem:[%s203 + $0x2c0] sm:$0xff]
        %v1185 = vld [vmem:[%s203 + $0x2c8] sm:$0xff]
        %v1186 = vld [vmem:[%s203 + $0x2d0] sm:$0xff]
        %v1187 = vld [vmem:[%s203 + $0x2d8] sm:$0xff]
        %v1188 = vld [vmem:[%s203 + $0x2e0] sm:$0xff]
        %v1189 = vld [vmem:[%s203 + $0x2e8] sm:$0xff]
        %v1190 = vld [vmem:[%s203 + $0x2f0] sm:$0xff]
        %v1191 = vld [vmem:[%s203 + $0x2f8] sm:$0xff]
        %v1192 = vld [vmem:[%s203 + $0x300] sm:$0xff]
        %v1193 = vld [vmem:[%s203 + $0x308] sm:$0xff]
        %v1194 = vld [vmem:[%s203 + $0x310] sm:$0xff]
        %v1195 = vld [vmem:[%s203 + $0x318] sm:$0xff]
        %v1196 = vld [vmem:[%s203 + $0x320] sm:$0xff]
        %v1197 = vld [vmem:[%s203 + $0x328] sm:$0xff]
        %v1198 = vld [vmem:[%s203 + $0x330] sm:$0xff]
        %v1199 = vld [vmem:[%s203 + $0x338] sm:$0xff]
        %v1200 = vld [vmem:[%s203 + $0x340] sm:$0xff]
        %v1201 = vld [vmem:[%s203 + $0x348] sm:$0xff]
        %v1202 = vld [vmem:[%s203 + $0x350] sm:$0xff]
        %v1203 = vld [vmem:[%s203 + $0x358] sm:$0xff]
        %v1204 = vld [vmem:[%s203 + $0x360] sm:$0xff]
        %v1205 = vld [vmem:[%s203 + $0x368] sm:$0xff]
        %v1206 = vld [vmem:[%s203 + $0x370] sm:$0xff]
        %v1207 = vld [vmem:[%s203 + $0x378] sm:$0xff]
        %v1208 = vld [vmem:[%s203 + $0x380] sm:$0xff]
        %v1209 = vld [vmem:[%s203 + $0x388] sm:$0xff]
        %v1210 = vld [vmem:[%s203 + $0x390] sm:$0xff]
        %v1211 = vld [vmem:[%s203 + $0x398] sm:$0xff]
        %v1212 = vld [vmem:[%s203 + $0x3a0] sm:$0xff]
        %v1213 = vld [vmem:[%s203 + $0x3a8] sm:$0xff]
        %v1214 = vld [vmem:[%s203 + $0x3b0] sm:$0xff]
        %v1215 = vld [vmem:[%s203 + $0x3b8] sm:$0xff]
        %v1216 = vld [vmem:[%s203 + $0x3c0] sm:$0xff]
        %v1217 = vld [vmem:[%s203 + $0x3c8] sm:$0xff]
        %v1218 = vld [vmem:[%s203 + $0x3d0] sm:$0xff]
        %v1219 = vld [vmem:[%s203 + $0x3d8] sm:$0xff]
        %v1220 = vld [vmem:[%s203 + $0x3e0] sm:$0xff]
        %v1221 = vld [vmem:[%s203 + $0x3e8] sm:$0xff]
        %v1222 = vld [vmem:[%s203 + $0x3f0] sm:$0xff]
        %v1223 = vld [vmem:[%s203 + $0x3f8] sm:$0xff]
        %v1224 = vld [vmem:[%s203 + $0x400] sm:$0xff]
        %v1225 = vld [vmem:[%s203 + $0x408] sm:$0xff]
        %v1226 = vld [vmem:[%s203 + $0x410] sm:$0xff]
        %v1227 = vld [vmem:[%s203 + $0x418] sm:$0xff]
        %v1228 = vld [vmem:[%s203 + $0x420] sm:$0xff]
        %v1229 = vld [vmem:[%s203 + $0x428] sm:$0xff]
        %v1230 = vld [vmem:[%s203 + $0x430] sm:$0xff]
        %v1231 = vld [vmem:[%s203 + $0x438] sm:$0xff]
        %v1232 = vld [vmem:[%s203 + $0x440] sm:$0xff]
        %v1233 = vld [vmem:[%s203 + $0x448] sm:$0xff]
        %v1234 = vld [vmem:[%s203 + $0x450] sm:$0xff]
        %v1235 = vld [vmem:[%s203 + $0x458] sm:$0xff]
        %v1236 = vld [vmem:[%s203 + $0x460] sm:$0xff]
        %v1237 = vld [vmem:[%s203 + $0x468] sm:$0xff]
        %v1238 = vld [vmem:[%s203 + $0x470] sm:$0xff]
        %v1239 = vld [vmem:[%s203 + $0x478] sm:$0xff]
        %v1240 = vld [vmem:[%s203 + $0x480] sm:$0xff]
        %v1241 = vld [vmem:[%s203 + $0x488] sm:$0xff]
        %v1242 = vld [vmem:[%s203 + $0x490] sm:$0xff]
        %v1243 = vld [vmem:[%s203 + $0x498] sm:$0xff]
        %v1244 = vld [vmem:[%s203 + $0x4a0] sm:$0xff]
        %v1245 = vld [vmem:[%s203 + $0x4a8] sm:$0xff]
        %v1246 = vld [vmem:[%s203 + $0x4b0] sm:$0xff]
        %v1247 = vld [vmem:[%s203 + $0x4b8] sm:$0xff]
        %v1248 = vld [vmem:[%s203 + $0x4c0] sm:$0xff]
        %v1249 = vld [vmem:[%s203 + $0x4c8] sm:$0xff]
        %v1250 = vld [vmem:[%s203 + $0x4d0] sm:$0xff]
        %v1251 = vld [vmem:[%s203 + $0x4d8] sm:$0xff]
        %v1252 = vld [vmem:[%s203 + $0x4e0] sm:$0xff]
        %v1253 = vld [vmem:[%s203 + $0x4e8] sm:$0xff]
        %v1254 = vld [vmem:[%s203 + $0x4f0] sm:$0xff]
        %v1255 = vld [vmem:[%s203 + $0x4f8] sm:$0xff]
        %v1256 = vld [vmem:[%s203 + $0x500] sm:$0xff]
        %v1257 = vld [vmem:[%s203 + $0x508] sm:$0xff]
        %v1258 = vld [vmem:[%s203 + $0x510] sm:$0xff]
        %v1259 = vld [vmem:[%s203 + $0x518] sm:$0xff]
        %v1260 = vld [vmem:[%s203 + $0x520] sm:$0xff]
        %v1261 = vld [vmem:[%s203 + $0x528] sm:$0xff]
        %v1262 = vld [vmem:[%s203 + $0x530] sm:$0xff]
        %v1263 = vld [vmem:[%s203 + $0x538] sm:$0xff]
        %v1264 = vld [vmem:[%s203 + $0x540] sm:$0xff]
        %v1265 = vld [vmem:[%s203 + $0x548] sm:$0xff]
        %v1266 = vld [vmem:[%s203 + $0x550] sm:$0xff]
        %v1267 = vld [vmem:[%s203 + $0x558] sm:$0xff]
        %v1268 = vld [vmem:[%s203 + $0x560] sm:$0xff]
        %v1269 = vld [vmem:[%s203 + $0x568] sm:$0xff]
        %v1270 = vld [vmem:[%s203 + $0x570] sm:$0xff]
        %v1271 = vld [vmem:[%s203 + $0x578] sm:$0xff]
        %v1272 = vld [vmem:[%s203 + $0x580] sm:$0xff]
        %v1273 = vld [vmem:[%s203 + $0x588] sm:$0xff]
        %v1274 = vld [vmem:[%s203 + $0x590] sm:$0xff]
        %v1275 = vld [vmem:[%s203 + $0x598] sm:$0xff]
        %v1276 = vld [vmem:[%s203 + $0x5a0] sm:$0xff]
        %v1277 = vld [vmem:[%s203 + $0x5a8] sm:$0xff]
        %v1278 = vld [vmem:[%s203 + $0x5b0] sm:$0xff]
        %v1279 = vld [vmem:[%s203 + $0x5b8] sm:$0xff]
        %v1280 = vld [vmem:[%s203 + $0x5c0] sm:$0xff]
        %v1281 = vld [vmem:[%s203 + $0x5c8] sm:$0xff]
        %v1282 = vld [vmem:[%s203 + $0x5d0] sm:$0xff]
        %v1283 = vld [vmem:[%s203 + $0x5d8] sm:$0xff]
        %v1284 = vld [vmem:[%s203 + $0x5e0] sm:$0xff]
        %v1285 = vld [vmem:[%s203 + $0x5e8] sm:$0xff]
        %v1286 = vld [vmem:[%s203 + $0x5f0] sm:$0xff]
        %v1287 = vld [vmem:[%s203 + $0x5f8] sm:$0xff]
        %v1288 = vld [vmem:[%s203 + $0x600] sm:$0xff]
        %v1289 = vld [vmem:[%s203 + $0x608] sm:$0xff]
        %v1290 = vld [vmem:[%s203 + $0x610] sm:$0xff]
        %v1291 = vld [vmem:[%s203 + $0x618] sm:$0xff]
        %v1292 = vld [vmem:[%s203 + $0x620] sm:$0xff]
        %v1293 = vld [vmem:[%s203 + $0x628] sm:$0xff]
        %v1294 = vld [vmem:[%s203 + $0x630] sm:$0xff]
        %v1295 = vld [vmem:[%s203 + $0x638] sm:$0xff]
        %v1296 = vld [vmem:[%s203 + $0x640] sm:$0xff]
        %v1297 = vld [vmem:[%s203 + $0x648] sm:$0xff]
        %v1298 = vld [vmem:[%s203 + $0x650] sm:$0xff]
        %v1299 = vld [vmem:[%s203 + $0x658] sm:$0xff]
        %v1300 = vld [vmem:[%s203 + $0x660] sm:$0xff]
        %v1301 = vld [vmem:[%s203 + $0x668] sm:$0xff]
        %v1302 = vld [vmem:[%s203 + $0x670] sm:$0xff]
        %v1303 = vld [vmem:[%s203 + $0x678] sm:$0xff]
        %v1304 = vld [vmem:[%s203 + $0x680] sm:$0xff]
        %v1305 = vld [vmem:[%s203 + $0x688] sm:$0xff]
        %v1306 = vld [vmem:[%s203 + $0x690] sm:$0xff]
        %v1307 = vld [vmem:[%s203 + $0x698] sm:$0xff]
        %v1308 = vld [vmem:[%s203 + $0x6a0] sm:$0xff]
        %v1309 = vld [vmem:[%s203 + $0x6a8] sm:$0xff]
        %v1310 = vld [vmem:[%s203 + $0x6b0] sm:$0xff]
        %v1311 = vld [vmem:[%s203 + $0x6b8] sm:$0xff]
        %v1312 = vld [vmem:[%s203 + $0x6c0] sm:$0xff]
        %v1313 = vld [vmem:[%s203 + $0x6c8] sm:$0xff]
        %v1314 = vld [vmem:[%s203 + $0x6d0] sm:$0xff]
        %v1315 = vld [vmem:[%s203 + $0x6d8] sm:$0xff]
        %v1316 = vld [vmem:[%s203 + $0x6e0] sm:$0xff]
        %v1317 = vld [vmem:[%s203 + $0x6e8] sm:$0xff]
        %v1318 = vld [vmem:[%s203 + $0x6f0] sm:$0xff]
        %v1319 = vld [vmem:[%s203 + $0x6f8] sm:$0xff]
        %v1320 = vld [vmem:[%s203 + $0x700] sm:$0xff]
        %v1321 = vld [vmem:[%s203 + $0x708] sm:$0xff]
        %v1322 = vld [vmem:[%s203 + $0x710] sm:$0xff]
        %v1323 = vld [vmem:[%s203 + $0x718] sm:$0xff]
        %v1324 = vld [vmem:[%s203 + $0x720] sm:$0xff]
        %v1325 = vld [vmem:[%s203 + $0x728] sm:$0xff]
        %v1326 = vld [vmem:[%s203 + $0x730] sm:$0xff]
        %v1327 = vld [vmem:[%s203 + $0x738] sm:$0xff]
        %v1328 = vld [vmem:[%s203 + $0x740] sm:$0xff]
        %v1329 = vld [vmem:[%s203 + $0x748] sm:$0xff]
        %v1330 = vld [vmem:[%s203 + $0x750] sm:$0xff]
        %v1331 = vld [vmem:[%s203 + $0x758] sm:$0xff]
        %v1332 = vld [vmem:[%s203 + $0x760] sm:$0xff]
        %v1333 = vld [vmem:[%s203 + $0x768] sm:$0xff]
        %v1334 = vld [vmem:[%s203 + $0x770] sm:$0xff]
        %v1335 = vld [vmem:[%s203 + $0x778] sm:$0xff]
        %v1336 = vld [vmem:[%s203 + $0x780] sm:$0xff]
        %v1337 = vld [vmem:[%s203 + $0x788] sm:$0xff]
        %v1338 = vld [vmem:[%s203 + $0x790] sm:$0xff]
        %v1339 = vld [vmem:[%s203 + $0x798] sm:$0xff]
        %v1340 = vld [vmem:[%s203 + $0x7a0] sm:$0xff]
        %v1341 = vld [vmem:[%s203 + $0x7a8] sm:$0xff]
        %v1342 = vld [vmem:[%s203 + $0x7b0] sm:$0xff]
        %v1343 = vld [vmem:[%s203 + $0x7b8] sm:$0xff]
        %v1344 = vld [vmem:[%s203 + $0x7c0] sm:$0xff]
        %v1345 = vld [vmem:[%s203 + $0x7c8] sm:$0xff]
        %v1346 = vld [vmem:[%s203 + $0x7d0] sm:$0xff]
        %v1347 = vld [vmem:[%s203 + $0x7d8] sm:$0xff]
        %v1348 = vld [vmem:[%s203 + $0x7e0] sm:$0xff]
        %v1349 = vld [vmem:[%s203 + $0x7e8] sm:$0xff]
        %v1350 = vld [vmem:[%s203 + $0x7f0] sm:$0xff]
        %v1351 = vld [vmem:[%s203 + $0x7f8] sm:$0xff]
        %v1352 = vld [vmem:[%s203 + $0x800] sm:$0xff]
        %v1353 = vld [vmem:[%s203 + $0x808] sm:$0xff]
        %v1354 = vld [vmem:[%s203 + $0x810] sm:$0xff]
        %v1355 = vld [vmem:[%s203 + $0x818] sm:$0xff]
        %v1356 = vld [vmem:[%s203 + $0x820] sm:$0xff]
        %v1357 = vld [vmem:[%s203 + $0x828] sm:$0xff]
        %v1358 = vld [vmem:[%s203 + $0x830] sm:$0xff]
        %v1359 = vld [vmem:[%s203 + $0x838] sm:$0xff]
        %v1360 = vld [vmem:[%s203 + $0x840] sm:$0xff]
        %v1361 = vld [vmem:[%s203 + $0x848] sm:$0xff]
        %v1362 = vld [vmem:[%s203 + $0x850] sm:$0xff]
        %v1363 = vld [vmem:[%s203 + $0x858] sm:$0xff]
        %v1364 = vld [vmem:[%s203 + $0x860] sm:$0xff]
        %v1365 = vld [vmem:[%s203 + $0x868] sm:$0xff]
        %v1366 = vld [vmem:[%s203 + $0x870] sm:$0xff]
        %v1367 = vld [vmem:[%s203 + $0x878] sm:$0xff]
        %v1368 = vld [vmem:[%s203 + $0x880] sm:$0xff]
        %v1369 = vld [vmem:[%s203 + $0x888] sm:$0xff]
        %v1370 = vld [vmem:[%s203 + $0x890] sm:$0xff]
        %v1371 = vld [vmem:[%s203 + $0x898] sm:$0xff]
        %v1372 = vld [vmem:[%s203 + $0x8a0] sm:$0xff]
        %v1373 = vld [vmem:[%s203 + $0x8a8] sm:$0xff]
        %v1374 = vld [vmem:[%s203 + $0x8b0] sm:$0xff]
        %v1375 = vld [vmem:[%s203 + $0x8b8] sm:$0xff]
        %v1376 = vld [vmem:[%s203 + $0x8c0] sm:$0xff]
        %v1377 = vld [vmem:[%s203 + $0x8c8] sm:$0xff]
        %v1378 = vld [vmem:[%s203 + $0x8d0] sm:$0xff]
        %v1379 = vld [vmem:[%s203 + $0x8d8] sm:$0xff]
        %v1380 = vld [vmem:[%s203 + $0x8e0] sm:$0xff]
        %v1381 = vld [vmem:[%s203 + $0x8e8] sm:$0xff]
        %v1382 = vld [vmem:[%s203 + $0x8f0] sm:$0xff]
        %v1383 = vld [vmem:[%s203 + $0x8f8] sm:$0xff]
        %v1384 = vld [vmem:[%s203 + $0x900] sm:$0xff]
        %v1385 = vld [vmem:[%s203 + $0x908] sm:$0xff]
        %v1386 = vld [vmem:[%s203 + $0x910] sm:$0xff]
        %v1387 = vld [vmem:[%s203 + $0x918] sm:$0xff]
        %v1388 = vld [vmem:[%s203 + $0x920] sm:$0xff]
        %v1389 = vld [vmem:[%s203 + $0x928] sm:$0xff]
        %v1390 = vld [vmem:[%s203 + $0x930] sm:$0xff]
        %v1391 = vld [vmem:[%s203 + $0x938] sm:$0xff]
        %v1392 = vld [vmem:[%s203 + $0x940] sm:$0xff]
        %v1393 = vld [vmem:[%s203 + $0x948] sm:$0xff]
        %v1394 = vld [vmem:[%s203 + $0x950] sm:$0xff]
        %v1395 = vld [vmem:[%s203 + $0x958] sm:$0xff]
        %v1396 = vld [vmem:[%s203 + $0x960] sm:$0xff]
        %v1397 = vld [vmem:[%s203 + $0x968] sm:$0xff]
        %v1398 = vld [vmem:[%s203 + $0x970] sm:$0xff]
        %v1399 = vld [vmem:[%s203 + $0x978] sm:$0xff]
        %v1400 = vld [vmem:[%s203 + $0x980] sm:$0xff]
        %v1401 = vld [vmem:[%s203 + $0x988] sm:$0xff]
        %v1402 = vld [vmem:[%s203 + $0x990] sm:$0xff]
        %v1403 = vld [vmem:[%s203 + $0x998] sm:$0xff]
        %1405 = vset.pattern.permute.xlu0 0
        %1406 = vperm.xlu0 %1405, %v450
        %v1407 = vpop.permute.xlu0 %1406
        %1410 = vset.pattern.permute.xlu0 0
        %1411 = vperm.xlu0 %1410, %v465
        %v1412 = vpop.permute.xlu0 %1411
        %1415 = vset.pattern.permute.xlu0 0
        %1416 = vperm.xlu0 %1415, %v480
        %v1417 = vpop.permute.xlu0 %1416
        %1420 = vset.pattern.permute.xlu0 0
        %1421 = vperm.xlu0 %1420, %v495
        %v1422 = vpop.permute.xlu0 %1421
        %1425 = vset.pattern.permute.xlu0 0
        %1426 = vperm.xlu0 %1425, %v510
        %v1427 = vpop.permute.xlu0 %1426
        %1430 = vset.pattern.permute.xlu0 0
        %1431 = vperm.xlu0 %1430, %v525
        %v1432 = vpop.permute.xlu0 %1431
        %1435 = vset.pattern.permute.xlu0 0
        %1436 = vperm.xlu0 %1435, %v540
        %v1437 = vpop.permute.xlu0 %1436
        %1440 = vset.pattern.permute.xlu0 0
        %1441 = vperm.xlu0 %1440, %v555
        %v1442 = vpop.permute.xlu0 %1441
        %1445 = vset.pattern.permute.xlu0 0
        %1446 = vperm.xlu0 %1445, %v570
        %v1447 = vpop.permute.xlu0 %1446
        %1450 = vset.pattern.permute.xlu0 0
        %1451 = vperm.xlu0 %1450, %v585
        %v1452 = vpop.permute.xlu0 %1451
        %1455 = vset.pattern.permute.xlu0 0
        %1456 = vperm.xlu0 %1455, %v600
        %v1457 = vpop.permute.xlu0 %1456
        %1460 = vset.pattern.permute.xlu0 0
        %1461 = vperm.xlu0 %1460, %v615
        %v1462 = vpop.permute.xlu0 %1461
        %1465 = vset.pattern.permute.xlu0 0
        %1466 = vperm.xlu0 %1465, %v630
        %v1467 = vpop.permute.xlu0 %1466
        %1470 = vset.pattern.permute.xlu0 0
        %1471 = vperm.xlu0 %1470, %v645
        %v1472 = vpop.permute.xlu0 %1471
        %1475 = vset.pattern.permute.xlu0 0
        %1476 = vperm.xlu0 %1475, %v660
        %v1477 = vpop.permute.xlu0 %1476
        %1480 = vset.pattern.permute.xlu0 0
        %1481 = vperm.xlu0 %1480, %v675
        %v1482 = vpop.permute.xlu0 %1481
        %1485 = vset.pattern.permute.xlu0 0
        %1486 = vperm.xlu0 %1485, %v690
        %v1487 = vpop.permute.xlu0 %1486
        %1490 = vset.pattern.permute.xlu0 0
        %1491 = vperm.xlu0 %1490, %v705
        %v1492 = vpop.permute.xlu0 %1491
        %1495 = vset.pattern.permute.xlu0 0
        %1496 = vperm.xlu0 %1495, %v720
        %v1497 = vpop.permute.xlu0 %1496
        %1500 = vset.pattern.permute.xlu0 0
        %1501 = vperm.xlu0 %1500, %v735
        %v1502 = vpop.permute.xlu0 %1501
        %1505 = vset.pattern.permute.xlu0 0
        %1506 = vperm.xlu0 %1505, %v750
        %v1507 = vpop.permute.xlu0 %1506
        %1510 = vset.pattern.permute.xlu0 0
        %1511 = vperm.xlu0 %1510, %v765
        %v1512 = vpop.permute.xlu0 %1511
        %1515 = vset.pattern.permute.xlu0 0
        %1516 = vperm.xlu0 %1515, %v780
        %v1517 = vpop.permute.xlu0 %1516
        %1520 = vset.pattern.permute.xlu0 0
        %1521 = vperm.xlu0 %1520, %v795
        %v1522 = vpop.permute.xlu0 %1521
        %1525 = vset.pattern.permute.xlu0 0
        %1526 = vperm.xlu0 %1525, %v810
        %v1527 = vpop.permute.xlu0 %1526
        %1530 = vset.pattern.permute.xlu0 0
        %1531 = vperm.xlu0 %1530, %v825
        %v1532 = vpop.permute.xlu0 %1531
        %1535 = vset.pattern.permute.xlu0 0
        %1536 = vperm.xlu0 %1535, %v840
        %v1537 = vpop.permute.xlu0 %1536
        %1540 = vset.pattern.permute.xlu0 0
        %1541 = vperm.xlu0 %1540, %v855
        %v1542 = vpop.permute.xlu0 %1541
        %1545 = vset.pattern.permute.xlu0 0
        %1546 = vperm.xlu0 %1545, %v870
        %v1547 = vpop.permute.xlu0 %1546
        %1550 = vset.pattern.permute.xlu0 0
        %1551 = vperm.xlu0 %1550, %v885
        %v1552 = vpop.permute.xlu0 %1551
        %1555 = vset.pattern.permute.xlu0 0
        %1556 = vperm.xlu0 %1555, %v900
        %v1557 = vpop.permute.xlu0 %1556
        %1560 = vset.pattern.permute.xlu0 0
        %1561 = vperm.xlu0 %1560, %v915
        %v1562 = vpop.permute.xlu0 %1561
        %1565 = vset.pattern.permute.xlu0 0
        %1566 = vperm.xlu0 %1565, %v930
        %v1567 = vpop.permute.xlu0 %1566
        %1570 = vset.pattern.permute.xlu0 0
        %1571 = vperm.xlu0 %1570, %v945
        %v1572 = vpop.permute.xlu0 %1571
        %1575 = vset.pattern.permute.xlu0 0
        %1576 = vperm.xlu0 %1575, %v960
        %v1577 = vpop.permute.xlu0 %1576
        %1580 = vset.pattern.permute.xlu0 0
        %1581 = vperm.xlu0 %1580, %v975
        %v1582 = vpop.permute.xlu0 %1581
        %1585 = vset.pattern.permute.xlu0 0
        %1586 = vperm.xlu0 %1585, %v990
        %v1587 = vpop.permute.xlu0 %1586
        %1590 = vset.pattern.permute.xlu0 0
        %1591 = vperm.xlu0 %1590, %v1005
        %v1592 = vpop.permute.xlu0 %1591
        %1595 = vset.pattern.permute.xlu0 0
        %1596 = vperm.xlu0 %1595, %v1020
        %v1597 = vpop.permute.xlu0 %1596
        %1600 = vset.pattern.permute.xlu0 0
        %1601 = vperm.xlu0 %1600, %v1035
        %v1602 = vpop.permute.xlu0 %1601
        %1605 = vset.pattern.permute.xlu0 0
        %1606 = vperm.xlu0 %1605, %v1050
        %v1607 = vpop.permute.xlu0 %1606
        %1610 = vset.pattern.permute.xlu0 0
        %1611 = vperm.xlu0 %1610, %v1065
        %v1612 = vpop.permute.xlu0 %1611
        %1615 = vset.pattern.permute.xlu0 0
        %1616 = vperm.xlu0 %1615, %v1080
        %v1617 = vpop.permute.xlu0 %1616
        %1620 = vset.pattern.permute.xlu0 0
        %1621 = vperm.xlu0 %1620, %v1095
        %v1622 = vpop.permute.xlu0 %1621
        %v1624 = vmul.f32 %v1407, %v1096
        %v1625 = vmul.f32 %v1407, %v1097
        %v1626 = vmul.f32 %v1407, %v1098
        %v1627 = vmul.f32 %v1407, %v1099
        %v1628 = vmul.f32 %v1407, %v1100
        %v1629 = vmul.f32 %v1407, %v1101
        %v1630 = vmul.f32 %v1407, %v1102
        %v1631 = vmul.f32 %v1412, %v1103
        %v1632 = vmul.f32 %v1412, %v1104
        %v1633 = vmul.f32 %v1412, %v1105
        %v1634 = vmul.f32 %v1412, %v1106
        %v1635 = vmul.f32 %v1412, %v1107
        %v1636 = vmul.f32 %v1412, %v1108
        %v1637 = vmul.f32 %v1412, %v1109
        %v1638 = vmul.f32 %v1417, %v1110
        %v1639 = vmul.f32 %v1417, %v1111
        %v1640 = vmul.f32 %v1417, %v1112
        %v1641 = vmul.f32 %v1417, %v1113
        %v1642 = vmul.f32 %v1417, %v1114
        %v1643 = vmul.f32 %v1417, %v1115
        %v1644 = vmul.f32 %v1417, %v1116
        %v1645 = vmul.f32 %v1422, %v1117
        %v1646 = vmul.f32 %v1422, %v1118
        %v1647 = vmul.f32 %v1422, %v1119
        %v1648 = vmul.f32 %v1422, %v1120
        %v1649 = vmul.f32 %v1422, %v1121
        %v1650 = vmul.f32 %v1422, %v1122
        %v1651 = vmul.f32 %v1422, %v1123
        %v1652 = vmul.f32 %v1427, %v1124
        %v1653 = vmul.f32 %v1427, %v1125
        %v1654 = vmul.f32 %v1427, %v1126
        %v1655 = vmul.f32 %v1427, %v1127
        %v1656 = vmul.f32 %v1427, %v1128
        %v1657 = vmul.f32 %v1427, %v1129
        %v1658 = vmul.f32 %v1427, %v1130
        %v1659 = vmul.f32 %v1432, %v1131
        %v1660 = vmul.f32 %v1432, %v1132
        %v1661 = vmul.f32 %v1432, %v1133
        %v1662 = vmul.f32 %v1432, %v1134
        %v1663 = vmul.f32 %v1432, %v1135
        %v1664 = vmul.f32 %v1432, %v1136
        %v1665 = vmul.f32 %v1432, %v1137
        %v1666 = vmul.f32 %v1437, %v1138
        %v1667 = vmul.f32 %v1437, %v1139
        %v1668 = vmul.f32 %v1437, %v1140
        %v1669 = vmul.f32 %v1437, %v1141
        %v1670 = vmul.f32 %v1437, %v1142
        %v1671 = vmul.f32 %v1437, %v1143
        %v1672 = vmul.f32 %v1437, %v1144
        %v1673 = vmul.f32 %v1442, %v1145
        %v1674 = vmul.f32 %v1442, %v1146
        %v1675 = vmul.f32 %v1442, %v1147
        %v1676 = vmul.f32 %v1442, %v1148
        %v1677 = vmul.f32 %v1442, %v1149
        %v1678 = vmul.f32 %v1442, %v1150
        %v1679 = vmul.f32 %v1442, %v1151
        %v1680 = vmul.f32 %v1447, %v1152
        %v1681 = vmul.f32 %v1447, %v1153
        %v1682 = vmul.f32 %v1447, %v1154
        %v1683 = vmul.f32 %v1447, %v1155
        %v1684 = vmul.f32 %v1447, %v1156
        %v1685 = vmul.f32 %v1447, %v1157
        %v1686 = vmul.f32 %v1447, %v1158
        %v1687 = vmul.f32 %v1452, %v1159
        %v1688 = vmul.f32 %v1452, %v1160
        %v1689 = vmul.f32 %v1452, %v1161
        %v1690 = vmul.f32 %v1452, %v1162
        %v1691 = vmul.f32 %v1452, %v1163
        %v1692 = vmul.f32 %v1452, %v1164
        %v1693 = vmul.f32 %v1452, %v1165
        %v1694 = vmul.f32 %v1457, %v1166
        %v1695 = vmul.f32 %v1457, %v1167
        %v1696 = vmul.f32 %v1457, %v1168
        %v1697 = vmul.f32 %v1457, %v1169
        %v1698 = vmul.f32 %v1457, %v1170
        %v1699 = vmul.f32 %v1457, %v1171
        %v1700 = vmul.f32 %v1457, %v1172
        %v1701 = vmul.f32 %v1462, %v1173
        %v1702 = vmul.f32 %v1462, %v1174
        %v1703 = vmul.f32 %v1462, %v1175
        %v1704 = vmul.f32 %v1462, %v1176
        %v1705 = vmul.f32 %v1462, %v1177
        %v1706 = vmul.f32 %v1462, %v1178
        %v1707 = vmul.f32 %v1462, %v1179
        %v1708 = vmul.f32 %v1467, %v1180
        %v1709 = vmul.f32 %v1467, %v1181
        %v1710 = vmul.f32 %v1467, %v1182
        %v1711 = vmul.f32 %v1467, %v1183
        %v1712 = vmul.f32 %v1467, %v1184
        %v1713 = vmul.f32 %v1467, %v1185
        %v1714 = vmul.f32 %v1467, %v1186
        %v1715 = vmul.f32 %v1472, %v1187
        %v1716 = vmul.f32 %v1472, %v1188
        %v1717 = vmul.f32 %v1472, %v1189
        %v1718 = vmul.f32 %v1472, %v1190
        %v1719 = vmul.f32 %v1472, %v1191
        %v1720 = vmul.f32 %v1472, %v1192
        %v1721 = vmul.f32 %v1472, %v1193
        %v1722 = vmul.f32 %v1477, %v1194
        %v1723 = vmul.f32 %v1477, %v1195
        %v1724 = vmul.f32 %v1477, %v1196
        %v1725 = vmul.f32 %v1477, %v1197
        %v1726 = vmul.f32 %v1477, %v1198
        %v1727 = vmul.f32 %v1477, %v1199
        %v1728 = vmul.f32 %v1477, %v1200
        %v1729 = vmul.f32 %v1482, %v1201
        %v1730 = vmul.f32 %v1482, %v1202
        %v1731 = vmul.f32 %v1482, %v1203
        %v1732 = vmul.f32 %v1482, %v1204
        %v1733 = vmul.f32 %v1482, %v1205
        %v1734 = vmul.f32 %v1482, %v1206
        %v1735 = vmul.f32 %v1482, %v1207
        %v1736 = vmul.f32 %v1487, %v1208
        %v1737 = vmul.f32 %v1487, %v1209
        %v1738 = vmul.f32 %v1487, %v1210
        %v1739 = vmul.f32 %v1487, %v1211
        %v1740 = vmul.f32 %v1487, %v1212
        %v1741 = vmul.f32 %v1487, %v1213
        %v1742 = vmul.f32 %v1487, %v1214
        %v1743 = vmul.f32 %v1492, %v1215
        %v1744 = vmul.f32 %v1492, %v1216
        %v1745 = vmul.f32 %v1492, %v1217
        %v1746 = vmul.f32 %v1492, %v1218
        %v1747 = vmul.f32 %v1492, %v1219
        %v1748 = vmul.f32 %v1492, %v1220
        %v1749 = vmul.f32 %v1492, %v1221
        %v1750 = vmul.f32 %v1497, %v1222
        %v1751 = vmul.f32 %v1497, %v1223
        %v1752 = vmul.f32 %v1497, %v1224
        %v1753 = vmul.f32 %v1497, %v1225
        %v1754 = vmul.f32 %v1497, %v1226
        %v1755 = vmul.f32 %v1497, %v1227
        %v1756 = vmul.f32 %v1497, %v1228
        %v1757 = vmul.f32 %v1502, %v1229
        %v1758 = vmul.f32 %v1502, %v1230
        %v1759 = vmul.f32 %v1502, %v1231
        %v1760 = vmul.f32 %v1502, %v1232
        %v1761 = vmul.f32 %v1502, %v1233
        %v1762 = vmul.f32 %v1502, %v1234
        %v1763 = vmul.f32 %v1502, %v1235
        %v1764 = vmul.f32 %v1507, %v1236
        %v1765 = vmul.f32 %v1507, %v1237
        %v1766 = vmul.f32 %v1507, %v1238
        %v1767 = vmul.f32 %v1507, %v1239
        %v1768 = vmul.f32 %v1507, %v1240
        %v1769 = vmul.f32 %v1507, %v1241
        %v1770 = vmul.f32 %v1507, %v1242
        %v1771 = vmul.f32 %v1512, %v1243
        %v1772 = vmul.f32 %v1512, %v1244
        %v1773 = vmul.f32 %v1512, %v1245
        %v1774 = vmul.f32 %v1512, %v1246
        %v1775 = vmul.f32 %v1512, %v1247
        %v1776 = vmul.f32 %v1512, %v1248
        %v1777 = vmul.f32 %v1512, %v1249
        %v1778 = vmul.f32 %v1517, %v1250
        %v1779 = vmul.f32 %v1517, %v1251
        %v1780 = vmul.f32 %v1517, %v1252
        %v1781 = vmul.f32 %v1517, %v1253
        %v1782 = vmul.f32 %v1517, %v1254
        %v1783 = vmul.f32 %v1517, %v1255
        %v1784 = vmul.f32 %v1517, %v1256
        %v1785 = vmul.f32 %v1522, %v1257
        %v1786 = vmul.f32 %v1522, %v1258
        %v1787 = vmul.f32 %v1522, %v1259
        %v1788 = vmul.f32 %v1522, %v1260
        %v1789 = vmul.f32 %v1522, %v1261
        %v1790 = vmul.f32 %v1522, %v1262
        %v1791 = vmul.f32 %v1522, %v1263
        %v1792 = vmul.f32 %v1527, %v1264
        %v1793 = vmul.f32 %v1527, %v1265
        %v1794 = vmul.f32 %v1527, %v1266
        %v1795 = vmul.f32 %v1527, %v1267
        %v1796 = vmul.f32 %v1527, %v1268
        %v1797 = vmul.f32 %v1527, %v1269
        %v1798 = vmul.f32 %v1527, %v1270
        %v1799 = vmul.f32 %v1532, %v1271
        %v1800 = vmul.f32 %v1532, %v1272
        %v1801 = vmul.f32 %v1532, %v1273
        %v1802 = vmul.f32 %v1532, %v1274
        %v1803 = vmul.f32 %v1532, %v1275
        %v1804 = vmul.f32 %v1532, %v1276
        %v1805 = vmul.f32 %v1532, %v1277
        %v1806 = vmul.f32 %v1537, %v1278
        %v1807 = vmul.f32 %v1537, %v1279
        %v1808 = vmul.f32 %v1537, %v1280
        %v1809 = vmul.f32 %v1537, %v1281
        %v1810 = vmul.f32 %v1537, %v1282
        %v1811 = vmul.f32 %v1537, %v1283
        %v1812 = vmul.f32 %v1537, %v1284
        %v1813 = vmul.f32 %v1542, %v1285
        %v1814 = vmul.f32 %v1542, %v1286
        %v1815 = vmul.f32 %v1542, %v1287
        %v1816 = vmul.f32 %v1542, %v1288
        %v1817 = vmul.f32 %v1542, %v1289
        %v1818 = vmul.f32 %v1542, %v1290
        %v1819 = vmul.f32 %v1542, %v1291
        %v1820 = vmul.f32 %v1547, %v1292
        %v1821 = vmul.f32 %v1547, %v1293
        %v1822 = vmul.f32 %v1547, %v1294
        %v1823 = vmul.f32 %v1547, %v1295
        %v1824 = vmul.f32 %v1547, %v1296
        %v1825 = vmul.f32 %v1547, %v1297
        %v1826 = vmul.f32 %v1547, %v1298
        %v1827 = vmul.f32 %v1552, %v1299
        %v1828 = vmul.f32 %v1552, %v1300
        %v1829 = vmul.f32 %v1552, %v1301
        %v1830 = vmul.f32 %v1552, %v1302
        %v1831 = vmul.f32 %v1552, %v1303
        %v1832 = vmul.f32 %v1552, %v1304
        %v1833 = vmul.f32 %v1552, %v1305
        %v1834 = vmul.f32 %v1557, %v1306
        %v1835 = vmul.f32 %v1557, %v1307
        %v1836 = vmul.f32 %v1557, %v1308
        %v1837 = vmul.f32 %v1557, %v1309
        %v1838 = vmul.f32 %v1557, %v1310
        %v1839 = vmul.f32 %v1557, %v1311
        %v1840 = vmul.f32 %v1557, %v1312
        %v1841 = vmul.f32 %v1562, %v1313
        %v1842 = vmul.f32 %v1562, %v1314
        %v1843 = vmul.f32 %v1562, %v1315
        %v1844 = vmul.f32 %v1562, %v1316
        %v1845 = vmul.f32 %v1562, %v1317
        %v1846 = vmul.f32 %v1562, %v1318
        %v1847 = vmul.f32 %v1562, %v1319
        %v1848 = vmul.f32 %v1567, %v1320
        %v1849 = vmul.f32 %v1567, %v1321
        %v1850 = vmul.f32 %v1567, %v1322
        %v1851 = vmul.f32 %v1567, %v1323
        %v1852 = vmul.f32 %v1567, %v1324
        %v1853 = vmul.f32 %v1567, %v1325
        %v1854 = vmul.f32 %v1567, %v1326
        %v1855 = vmul.f32 %v1572, %v1327
        %v1856 = vmul.f32 %v1572, %v1328
        %v1857 = vmul.f32 %v1572, %v1329
        %v1858 = vmul.f32 %v1572, %v1330
        %v1859 = vmul.f32 %v1572, %v1331
        %v1860 = vmul.f32 %v1572, %v1332
        %v1861 = vmul.f32 %v1572, %v1333
        %v1862 = vmul.f32 %v1577, %v1334
        %v1863 = vmul.f32 %v1577, %v1335
        %v1864 = vmul.f32 %v1577, %v1336
        %v1865 = vmul.f32 %v1577, %v1337
        %v1866 = vmul.f32 %v1577, %v1338
        %v1867 = vmul.f32 %v1577, %v1339
        %v1868 = vmul.f32 %v1577, %v1340
        %v1869 = vmul.f32 %v1582, %v1341
        %v1870 = vmul.f32 %v1582, %v1342
        %v1871 = vmul.f32 %v1582, %v1343
        %v1872 = vmul.f32 %v1582, %v1344
        %v1873 = vmul.f32 %v1582, %v1345
        %v1874 = vmul.f32 %v1582, %v1346
        %v1875 = vmul.f32 %v1582, %v1347
        %v1876 = vmul.f32 %v1587, %v1348
        %v1877 = vmul.f32 %v1587, %v1349
        %v1878 = vmul.f32 %v1587, %v1350
        %v1879 = vmul.f32 %v1587, %v1351
        %v1880 = vmul.f32 %v1587, %v1352
        %v1881 = vmul.f32 %v1587, %v1353
        %v1882 = vmul.f32 %v1587, %v1354
        %v1883 = vmul.f32 %v1592, %v1355
        %v1884 = vmul.f32 %v1592, %v1356
        %v1885 = vmul.f32 %v1592, %v1357
        %v1886 = vmul.f32 %v1592, %v1358
        %v1887 = vmul.f32 %v1592, %v1359
        %v1888 = vmul.f32 %v1592, %v1360
        %v1889 = vmul.f32 %v1592, %v1361
        %v1890 = vmul.f32 %v1597, %v1362
        %v1891 = vmul.f32 %v1597, %v1363
        %v1892 = vmul.f32 %v1597, %v1364
        %v1893 = vmul.f32 %v1597, %v1365
        %v1894 = vmul.f32 %v1597, %v1366
        %v1895 = vmul.f32 %v1597, %v1367
        %v1896 = vmul.f32 %v1597, %v1368
        %v1897 = vmul.f32 %v1602, %v1369
        %v1898 = vmul.f32 %v1602, %v1370
        %v1899 = vmul.f32 %v1602, %v1371
        %v1900 = vmul.f32 %v1602, %v1372
        %v1901 = vmul.f32 %v1602, %v1373
        %v1902 = vmul.f32 %v1602, %v1374
        %v1903 = vmul.f32 %v1602, %v1375
        %v1904 = vmul.f32 %v1607, %v1376
        %v1905 = vmul.f32 %v1607, %v1377
        %v1906 = vmul.f32 %v1607, %v1378
        %v1907 = vmul.f32 %v1607, %v1379
        %v1908 = vmul.f32 %v1607, %v1380
        %v1909 = vmul.f32 %v1607, %v1381
        %v1910 = vmul.f32 %v1607, %v1382
        %v1911 = vmul.f32 %v1612, %v1383
        %v1912 = vmul.f32 %v1612, %v1384
        %v1913 = vmul.f32 %v1612, %v1385
        %v1914 = vmul.f32 %v1612, %v1386
        %v1915 = vmul.f32 %v1612, %v1387
        %v1916 = vmul.f32 %v1612, %v1388
        %v1917 = vmul.f32 %v1612, %v1389
        %v1918 = vmul.f32 %v1617, %v1390
        %v1919 = vmul.f32 %v1617, %v1391
        %v1920 = vmul.f32 %v1617, %v1392
        %v1921 = vmul.f32 %v1617, %v1393
        %v1922 = vmul.f32 %v1617, %v1394
        %v1923 = vmul.f32 %v1617, %v1395
        %v1924 = vmul.f32 %v1617, %v1396
        %v1925 = vmul.f32 %v1622, %v1397
        %v1926 = vmul.f32 %v1622, %v1398
        %v1927 = vmul.f32 %v1622, %v1399
        %v1928 = vmul.f32 %v1622, %v1400
        %v1929 = vmul.f32 %v1622, %v1401
        %v1930 = vmul.f32 %v1622, %v1402
        %v1931 = vmul.f32 %v1622, %v1403
        %1932 = vst [vmem:[%s178] sm:$0xff] %v1624
        %1933 = vst [vmem:[%s178 + $0x8] sm:$0xff] %v1625
        %1934 = vst [vmem:[%s178 + $0x10] sm:$0xff] %v1626
        %1935 = vst [vmem:[%s178 + $0x18] sm:$0xff] %v1627
        %1936 = vst [vmem:[%s178 + $0x20] sm:$0xff] %v1628
        %1937 = vst [vmem:[%s178 + $0x28] sm:$0xff] %v1629
        %vm1938 = vcmask 130048
        %1939 = vst.msk [vmem:[%s178 + $0x30] sm:$0xff] %vm1938, %v1630
        %1940 = vst [vmem:[%s178 + $0x38] sm:$0xff] %v1631
        %1941 = vst [vmem:[%s178 + $0x40] sm:$0xff] %v1632
        %1942 = vst [vmem:[%s178 + $0x48] sm:$0xff] %v1633
        %1943 = vst [vmem:[%s178 + $0x50] sm:$0xff] %v1634
        %1944 = vst [vmem:[%s178 + $0x58] sm:$0xff] %v1635
        %1945 = vst [vmem:[%s178 + $0x60] sm:$0xff] %v1636
        %1946 = vst.msk [vmem:[%s178 + $0x68] sm:$0xff] %vm1938, %v1637
        %1947 = vst [vmem:[%s178 + $0x70] sm:$0xff] %v1638
        %1948 = vst [vmem:[%s178 + $0x78] sm:$0xff] %v1639
        %1949 = vst [vmem:[%s178 + $0x80] sm:$0xff] %v1640
        %1950 = vst [vmem:[%s178 + $0x88] sm:$0xff] %v1641
        %1951 = vst [vmem:[%s178 + $0x90] sm:$0xff] %v1642
        %1952 = vst [vmem:[%s178 + $0x98] sm:$0xff] %v1643
        %1953 = vst.msk [vmem:[%s178 + $0xa0] sm:$0xff] %vm1938, %v1644
        %1954 = vst [vmem:[%s178 + $0xa8] sm:$0xff] %v1645
        %1955 = vst [vmem:[%s178 + $0xb0] sm:$0xff] %v1646
        %1956 = vst [vmem:[%s178 + $0xb8] sm:$0xff] %v1647
        %1957 = vst [vmem:[%s178 + $0xc0] sm:$0xff] %v1648
        %1958 = vst [vmem:[%s178 + $0xc8] sm:$0xff] %v1649
        %1959 = vst [vmem:[%s178 + $0xd0] sm:$0xff] %v1650
        %1960 = vst.msk [vmem:[%s178 + $0xd8] sm:$0xff] %vm1938, %v1651
        %1961 = vst [vmem:[%s178 + $0xe0] sm:$0xff] %v1652
        %1962 = vst [vmem:[%s178 + $0xe8] sm:$0xff] %v1653
        %1963 = vst [vmem:[%s178 + $0xf0] sm:$0xff] %v1654
        %1964 = vst [vmem:[%s178 + $0xf8] sm:$0xff] %v1655
        %1965 = vst [vmem:[%s178 + $0x100] sm:$0xff] %v1656
        %1966 = vst [vmem:[%s178 + $0x108] sm:$0xff] %v1657
        %1967 = vst.msk [vmem:[%s178 + $0x110] sm:$0xff] %vm1938, %v1658
        %1968 = vst [vmem:[%s178 + $0x118] sm:$0xff] %v1659
        %1969 = vst [vmem:[%s178 + $0x120] sm:$0xff] %v1660
        %1970 = vst [vmem:[%s178 + $0x128] sm:$0xff] %v1661
        %1971 = vst [vmem:[%s178 + $0x130] sm:$0xff] %v1662
        %1972 = vst [vmem:[%s178 + $0x138] sm:$0xff] %v1663
        %1973 = vst [vmem:[%s178 + $0x140] sm:$0xff] %v1664
        %1974 = vst.msk [vmem:[%s178 + $0x148] sm:$0xff] %vm1938, %v1665
        %1975 = vst [vmem:[%s178 + $0x150] sm:$0xff] %v1666
        %1976 = vst [vmem:[%s178 + $0x158] sm:$0xff] %v1667
        %1977 = vst [vmem:[%s178 + $0x160] sm:$0xff] %v1668
        %1978 = vst [vmem:[%s178 + $0x168] sm:$0xff] %v1669
        %1979 = vst [vmem:[%s178 + $0x170] sm:$0xff] %v1670
        %1980 = vst [vmem:[%s178 + $0x178] sm:$0xff] %v1671
        %1981 = vst.msk [vmem:[%s178 + $0x180] sm:$0xff] %vm1938, %v1672
        %1982 = vst [vmem:[%s178 + $0x188] sm:$0xff] %v1673
        %1983 = vst [vmem:[%s178 + $0x190] sm:$0xff] %v1674
        %1984 = vst [vmem:[%s178 + $0x198] sm:$0xff] %v1675
        %1985 = vst [vmem:[%s178 + $0x1a0] sm:$0xff] %v1676
        %1986 = vst [vmem:[%s178 + $0x1a8] sm:$0xff] %v1677
        %1987 = vst [vmem:[%s178 + $0x1b0] sm:$0xff] %v1678
        %1988 = vst.msk [vmem:[%s178 + $0x1b8] sm:$0xff] %vm1938, %v1679
        %1989 = vst [vmem:[%s178 + $0x1c0] sm:$0xff] %v1680
        %1990 = vst [vmem:[%s178 + $0x1c8] sm:$0xff] %v1681
        %1991 = vst [vmem:[%s178 + $0x1d0] sm:$0xff] %v1682
        %1992 = vst [vmem:[%s178 + $0x1d8] sm:$0xff] %v1683
        %1993 = vst [vmem:[%s178 + $0x1e0] sm:$0xff] %v1684
        %1994 = vst [vmem:[%s178 + $0x1e8] sm:$0xff] %v1685
        %1995 = vst.msk [vmem:[%s178 + $0x1f0] sm:$0xff] %vm1938, %v1686
        %1996 = vst [vmem:[%s178 + $0x1f8] sm:$0xff] %v1687
        %1997 = vst [vmem:[%s178 + $0x200] sm:$0xff] %v1688
        %1998 = vst [vmem:[%s178 + $0x208] sm:$0xff] %v1689
        %1999 = vst [vmem:[%s178 + $0x210] sm:$0xff] %v1690
        %2000 = vst [vmem:[%s178 + $0x218] sm:$0xff] %v1691
        %2001 = vst [vmem:[%s178 + $0x220] sm:$0xff] %v1692
        %2002 = vst.msk [vmem:[%s178 + $0x228] sm:$0xff] %vm1938, %v1693
        %2003 = vst [vmem:[%s178 + $0x230] sm:$0xff] %v1694
        %2004 = vst [vmem:[%s178 + $0x238] sm:$0xff] %v1695
        %2005 = vst [vmem:[%s178 + $0x240] sm:$0xff] %v1696
        %2006 = vst [vmem:[%s178 + $0x248] sm:$0xff] %v1697
        %2007 = vst [vmem:[%s178 + $0x250] sm:$0xff] %v1698
        %2008 = vst [vmem:[%s178 + $0x258] sm:$0xff] %v1699
        %2009 = vst.msk [vmem:[%s178 + $0x260] sm:$0xff] %vm1938, %v1700
        %2010 = vst [vmem:[%s178 + $0x268] sm:$0xff] %v1701
        %2011 = vst [vmem:[%s178 + $0x270] sm:$0xff] %v1702
        %2012 = vst [vmem:[%s178 + $0x278] sm:$0xff] %v1703
        %2013 = vst [vmem:[%s178 + $0x280] sm:$0xff] %v1704
        %2014 = vst [vmem:[%s178 + $0x288] sm:$0xff] %v1705
        %2015 = vst [vmem:[%s178 + $0x290] sm:$0xff] %v1706
        %2016 = vst.msk [vmem:[%s178 + $0x298] sm:$0xff] %vm1938, %v1707
        %2017 = vst [vmem:[%s178 + $0x2a0] sm:$0xff] %v1708
        %2018 = vst [vmem:[%s178 + $0x2a8] sm:$0xff] %v1709
        %2019 = vst [vmem:[%s178 + $0x2b0] sm:$0xff] %v1710
        %2020 = vst [vmem:[%s178 + $0x2b8] sm:$0xff] %v1711
        %2021 = vst [vmem:[%s178 + $0x2c0] sm:$0xff] %v1712
        %2022 = vst [vmem:[%s178 + $0x2c8] sm:$0xff] %v1713
        %2023 = vst.msk [vmem:[%s178 + $0x2d0] sm:$0xff] %vm1938, %v1714
        %2024 = vst [vmem:[%s178 + $0x2d8] sm:$0xff] %v1715
        %2025 = vst [vmem:[%s178 + $0x2e0] sm:$0xff] %v1716
        %2026 = vst [vmem:[%s178 + $0x2e8] sm:$0xff] %v1717
        %2027 = vst [vmem:[%s178 + $0x2f0] sm:$0xff] %v1718
        %2028 = vst [vmem:[%s178 + $0x2f8] sm:$0xff] %v1719
        %2029 = vst [vmem:[%s178 + $0x300] sm:$0xff] %v1720
        %2030 = vst.msk [vmem:[%s178 + $0x308] sm:$0xff] %vm1938, %v1721
        %2031 = vst [vmem:[%s178 + $0x310] sm:$0xff] %v1722
        %2032 = vst [vmem:[%s178 + $0x318] sm:$0xff] %v1723
        %2033 = vst [vmem:[%s178 + $0x320] sm:$0xff] %v1724
        %2034 = vst [vmem:[%s178 + $0x328] sm:$0xff] %v1725
        %2035 = vst [vmem:[%s178 + $0x330] sm:$0xff] %v1726
        %2036 = vst [vmem:[%s178 + $0x338] sm:$0xff] %v1727
        %2037 = vst.msk [vmem:[%s178 + $0x340] sm:$0xff] %vm1938, %v1728
        %2038 = vst [vmem:[%s178 + $0x348] sm:$0xff] %v1729
        %2039 = vst [vmem:[%s178 + $0x350] sm:$0xff] %v1730
        %2040 = vst [vmem:[%s178 + $0x358] sm:$0xff] %v1731
        %2041 = vst [vmem:[%s178 + $0x360] sm:$0xff] %v1732
        %2042 = vst [vmem:[%s178 + $0x368] sm:$0xff] %v1733
        %2043 = vst [vmem:[%s178 + $0x370] sm:$0xff] %v1734
        %2044 = vst.msk [vmem:[%s178 + $0x378] sm:$0xff] %vm1938, %v1735
        %2045 = vst [vmem:[%s178 + $0x380] sm:$0xff] %v1736
        %2046 = vst [vmem:[%s178 + $0x388] sm:$0xff] %v1737
        %2047 = vst [vmem:[%s178 + $0x390] sm:$0xff] %v1738
        %2048 = vst [vmem:[%s178 + $0x398] sm:$0xff] %v1739
        %2049 = vst [vmem:[%s178 + $0x3a0] sm:$0xff] %v1740
        %2050 = vst [vmem:[%s178 + $0x3a8] sm:$0xff] %v1741
        %2051 = vst.msk [vmem:[%s178 + $0x3b0] sm:$0xff] %vm1938, %v1742
        %2052 = vst [vmem:[%s178 + $0x3b8] sm:$0xff] %v1743
        %2053 = vst [vmem:[%s178 + $0x3c0] sm:$0xff] %v1744
        %2054 = vst [vmem:[%s178 + $0x3c8] sm:$0xff] %v1745
        %2055 = vst [vmem:[%s178 + $0x3d0] sm:$0xff] %v1746
        %2056 = vst [vmem:[%s178 + $0x3d8] sm:$0xff] %v1747
        %2057 = vst [vmem:[%s178 + $0x3e0] sm:$0xff] %v1748
        %2058 = vst.msk [vmem:[%s178 + $0x3e8] sm:$0xff] %vm1938, %v1749
        %2059 = vst [vmem:[%s178 + $0x3f0] sm:$0xff] %v1750
        %2060 = vst [vmem:[%s178 + $0x3f8] sm:$0xff] %v1751
        %2061 = vst [vmem:[%s178 + $0x400] sm:$0xff] %v1752
        %2062 = vst [vmem:[%s178 + $0x408] sm:$0xff] %v1753
        %2063 = vst [vmem:[%s178 + $0x410] sm:$0xff] %v1754
        %2064 = vst [vmem:[%s178 + $0x418] sm:$0xff] %v1755
        %2065 = vst.msk [vmem:[%s178 + $0x420] sm:$0xff] %vm1938, %v1756
        %2066 = vst [vmem:[%s178 + $0x428] sm:$0xff] %v1757
        %2067 = vst [vmem:[%s178 + $0x430] sm:$0xff] %v1758
        %2068 = vst [vmem:[%s178 + $0x438] sm:$0xff] %v1759
        %2069 = vst [vmem:[%s178 + $0x440] sm:$0xff] %v1760
        %2070 = vst [vmem:[%s178 + $0x448] sm:$0xff] %v1761
        %2071 = vst [vmem:[%s178 + $0x450] sm:$0xff] %v1762
        %2072 = vst.msk [vmem:[%s178 + $0x458] sm:$0xff] %vm1938, %v1763
        %2073 = vst [vmem:[%s178 + $0x460] sm:$0xff] %v1764
        %2074 = vst [vmem:[%s178 + $0x468] sm:$0xff] %v1765
        %2075 = vst [vmem:[%s178 + $0x470] sm:$0xff] %v1766
        %2076 = vst [vmem:[%s178 + $0x478] sm:$0xff] %v1767
        %2077 = vst [vmem:[%s178 + $0x480] sm:$0xff] %v1768
        %2078 = vst [vmem:[%s178 + $0x488] sm:$0xff] %v1769
        %2079 = vst.msk [vmem:[%s178 + $0x490] sm:$0xff] %vm1938, %v1770
        %2080 = vst [vmem:[%s178 + $0x498] sm:$0xff] %v1771
        %2081 = vst [vmem:[%s178 + $0x4a0] sm:$0xff] %v1772
        %2082 = vst [vmem:[%s178 + $0x4a8] sm:$0xff] %v1773
        %2083 = vst [vmem:[%s178 + $0x4b0] sm:$0xff] %v1774
        %2084 = vst [vmem:[%s178 + $0x4b8] sm:$0xff] %v1775
        %2085 = vst [vmem:[%s178 + $0x4c0] sm:$0xff] %v1776
        %2086 = vst.msk [vmem:[%s178 + $0x4c8] sm:$0xff] %vm1938, %v1777
        %2087 = vst [vmem:[%s178 + $0x4d0] sm:$0xff] %v1778
        %2088 = vst [vmem:[%s178 + $0x4d8] sm:$0xff] %v1779
        %2089 = vst [vmem:[%s178 + $0x4e0] sm:$0xff] %v1780
        %2090 = vst [vmem:[%s178 + $0x4e8] sm:$0xff] %v1781
        %2091 = vst [vmem:[%s178 + $0x4f0] sm:$0xff] %v1782
        %2092 = vst [vmem:[%s178 + $0x4f8] sm:$0xff] %v1783
        %2093 = vst.msk [vmem:[%s178 + $0x500] sm:$0xff] %vm1938, %v1784
        %2094 = vst [vmem:[%s178 + $0x508] sm:$0xff] %v1785
        %2095 = vst [vmem:[%s178 + $0x510] sm:$0xff] %v1786
        %2096 = vst [vmem:[%s178 + $0x518] sm:$0xff] %v1787
        %2097 = vst [vmem:[%s178 + $0x520] sm:$0xff] %v1788
        %2098 = vst [vmem:[%s178 + $0x528] sm:$0xff] %v1789
        %2099 = vst [vmem:[%s178 + $0x530] sm:$0xff] %v1790
        %2100 = vst.msk [vmem:[%s178 + $0x538] sm:$0xff] %vm1938, %v1791
        %2101 = vst [vmem:[%s178 + $0x540] sm:$0xff] %v1792
        %2102 = vst [vmem:[%s178 + $0x548] sm:$0xff] %v1793
        %2103 = vst [vmem:[%s178 + $0x550] sm:$0xff] %v1794
        %2104 = vst [vmem:[%s178 + $0x558] sm:$0xff] %v1795
        %2105 = vst [vmem:[%s178 + $0x560] sm:$0xff] %v1796
        %2106 = vst [vmem:[%s178 + $0x568] sm:$0xff] %v1797
        %2107 = vst.msk [vmem:[%s178 + $0x570] sm:$0xff] %vm1938, %v1798
        %2108 = vst [vmem:[%s178 + $0x578] sm:$0xff] %v1799
        %2109 = vst [vmem:[%s178 + $0x580] sm:$0xff] %v1800
        %2110 = vst [vmem:[%s178 + $0x588] sm:$0xff] %v1801
        %2111 = vst [vmem:[%s178 + $0x590] sm:$0xff] %v1802
        %2112 = vst [vmem:[%s178 + $0x598] sm:$0xff] %v1803
        %2113 = vst [vmem:[%s178 + $0x5a0] sm:$0xff] %v1804
        %2114 = vst.msk [vmem:[%s178 + $0x5a8] sm:$0xff] %vm1938, %v1805
        %2115 = vst [vmem:[%s178 + $0x5b0] sm:$0xff] %v1806
        %2116 = vst [vmem:[%s178 + $0x5b8] sm:$0xff] %v1807
        %2117 = vst [vmem:[%s178 + $0x5c0] sm:$0xff] %v1808
        %2118 = vst [vmem:[%s178 + $0x5c8] sm:$0xff] %v1809
        %2119 = vst [vmem:[%s178 + $0x5d0] sm:$0xff] %v1810
        %2120 = vst [vmem:[%s178 + $0x5d8] sm:$0xff] %v1811
        %2121 = vst.msk [vmem:[%s178 + $0x5e0] sm:$0xff] %vm1938, %v1812
        %2122 = vst [vmem:[%s178 + $0x5e8] sm:$0xff] %v1813
        %2123 = vst [vmem:[%s178 + $0x5f0] sm:$0xff] %v1814
        %2124 = vst [vmem:[%s178 + $0x5f8] sm:$0xff] %v1815
        %2125 = vst [vmem:[%s178 + $0x600] sm:$0xff] %v1816
        %2126 = vst [vmem:[%s178 + $0x608] sm:$0xff] %v1817
        %2127 = vst [vmem:[%s178 + $0x610] sm:$0xff] %v1818
        %2128 = vst.msk [vmem:[%s178 + $0x618] sm:$0xff] %vm1938, %v1819
        %2129 = vst [vmem:[%s178 + $0x620] sm:$0xff] %v1820
        %2130 = vst [vmem:[%s178 + $0x628] sm:$0xff] %v1821
        %2131 = vst [vmem:[%s178 + $0x630] sm:$0xff] %v1822
        %2132 = vst [vmem:[%s178 + $0x638] sm:$0xff] %v1823
        %2133 = vst [vmem:[%s178 + $0x640] sm:$0xff] %v1824
        %2134 = vst [vmem:[%s178 + $0x648] sm:$0xff] %v1825
        %2135 = vst.msk [vmem:[%s178 + $0x650] sm:$0xff] %vm1938, %v1826
        %2136 = vst [vmem:[%s178 + $0x658] sm:$0xff] %v1827
        %2137 = vst [vmem:[%s178 + $0x660] sm:$0xff] %v1828
        %2138 = vst [vmem:[%s178 + $0x668] sm:$0xff] %v1829
        %2139 = vst [vmem:[%s178 + $0x670] sm:$0xff] %v1830
        %2140 = vst [vmem:[%s178 + $0x678] sm:$0xff] %v1831
        %2141 = vst [vmem:[%s178 + $0x680] sm:$0xff] %v1832
        %2142 = vst.msk [vmem:[%s178 + $0x688] sm:$0xff] %vm1938, %v1833
        %2143 = vst [vmem:[%s178 + $0x690] sm:$0xff] %v1834
        %2144 = vst [vmem:[%s178 + $0x698] sm:$0xff] %v1835
        %2145 = vst [vmem:[%s178 + $0x6a0] sm:$0xff] %v1836
        %2146 = vst [vmem:[%s178 + $0x6a8] sm:$0xff] %v1837
        %2147 = vst [vmem:[%s178 + $0x6b0] sm:$0xff] %v1838
        %2148 = vst [vmem:[%s178 + $0x6b8] sm:$0xff] %v1839
        %2149 = vst.msk [vmem:[%s178 + $0x6c0] sm:$0xff] %vm1938, %v1840
        %2150 = vst [vmem:[%s178 + $0x6c8] sm:$0xff] %v1841
        %2151 = vst [vmem:[%s178 + $0x6d0] sm:$0xff] %v1842
        %2152 = vst [vmem:[%s178 + $0x6d8] sm:$0xff] %v1843
        %2153 = vst [vmem:[%s178 + $0x6e0] sm:$0xff] %v1844
        %2154 = vst [vmem:[%s178 + $0x6e8] sm:$0xff] %v1845
        %2155 = vst [vmem:[%s178 + $0x6f0] sm:$0xff] %v1846
        %2156 = vst.msk [vmem:[%s178 + $0x6f8] sm:$0xff] %vm1938, %v1847
        %2157 = vst [vmem:[%s178 + $0x700] sm:$0xff] %v1848
        %2158 = vst [vmem:[%s178 + $0x708] sm:$0xff] %v1849
        %2159 = vst [vmem:[%s178 + $0x710] sm:$0xff] %v1850
        %2160 = vst [vmem:[%s178 + $0x718] sm:$0xff] %v1851
        %2161 = vst [vmem:[%s178 + $0x720] sm:$0xff] %v1852
        %2162 = vst [vmem:[%s178 + $0x728] sm:$0xff] %v1853
        %2163 = vst.msk [vmem:[%s178 + $0x730] sm:$0xff] %vm1938, %v1854
        %2164 = vst [vmem:[%s178 + $0x738] sm:$0xff] %v1855
        %2165 = vst [vmem:[%s178 + $0x740] sm:$0xff] %v1856
        %2166 = vst [vmem:[%s178 + $0x748] sm:$0xff] %v1857
        %2167 = vst [vmem:[%s178 + $0x750] sm:$0xff] %v1858
        %2168 = vst [vmem:[%s178 + $0x758] sm:$0xff] %v1859
        %2169 = vst [vmem:[%s178 + $0x760] sm:$0xff] %v1860
        %2170 = vst.msk [vmem:[%s178 + $0x768] sm:$0xff] %vm1938, %v1861
        %2171 = vst [vmem:[%s178 + $0x770] sm:$0xff] %v1862
        %2172 = vst [vmem:[%s178 + $0x778] sm:$0xff] %v1863
        %2173 = vst [vmem:[%s178 + $0x780] sm:$0xff] %v1864
        %2174 = vst [vmem:[%s178 + $0x788] sm:$0xff] %v1865
        %2175 = vst [vmem:[%s178 + $0x790] sm:$0xff] %v1866
        %2176 = vst [vmem:[%s178 + $0x798] sm:$0xff] %v1867
        %2177 = vst.msk [vmem:[%s178 + $0x7a0] sm:$0xff] %vm1938, %v1868
        %2178 = vst [vmem:[%s178 + $0x7a8] sm:$0xff] %v1869
        %2179 = vst [vmem:[%s178 + $0x7b0] sm:$0xff] %v1870
        %2180 = vst [vmem:[%s178 + $0x7b8] sm:$0xff] %v1871
        %2181 = vst [vmem:[%s178 + $0x7c0] sm:$0xff] %v1872
        %2182 = vst [vmem:[%s178 + $0x7c8] sm:$0xff] %v1873
        %2183 = vst [vmem:[%s178 + $0x7d0] sm:$0xff] %v1874
        %2184 = vst.msk [vmem:[%s178 + $0x7d8] sm:$0xff] %vm1938, %v1875
        %2185 = vst [vmem:[%s178 + $0x7e0] sm:$0xff] %v1876
        %2186 = vst [vmem:[%s178 + $0x7e8] sm:$0xff] %v1877
        %2187 = vst [vmem:[%s178 + $0x7f0] sm:$0xff] %v1878
        %2188 = vst [vmem:[%s178 + $0x7f8] sm:$0xff] %v1879
        %2189 = vst [vmem:[%s178 + $0x800] sm:$0xff] %v1880
        %2190 = vst [vmem:[%s178 + $0x808] sm:$0xff] %v1881
        %2191 = vst.msk [vmem:[%s178 + $0x810] sm:$0xff] %vm1938, %v1882
        %2192 = vst [vmem:[%s178 + $0x818] sm:$0xff] %v1883
        %2193 = vst [vmem:[%s178 + $0x820] sm:$0xff] %v1884
        %2194 = vst [vmem:[%s178 + $0x828] sm:$0xff] %v1885
        %2195 = vst [vmem:[%s178 + $0x830] sm:$0xff] %v1886
        %2196 = vst [vmem:[%s178 + $0x838] sm:$0xff] %v1887
        %2197 = vst [vmem:[%s178 + $0x840] sm:$0xff] %v1888
        %2198 = vst.msk [vmem:[%s178 + $0x848] sm:$0xff] %vm1938, %v1889
        %2199 = vst [vmem:[%s178 + $0x850] sm:$0xff] %v1890
        %2200 = vst [vmem:[%s178 + $0x858] sm:$0xff] %v1891
        %2201 = vst [vmem:[%s178 + $0x860] sm:$0xff] %v1892
        %2202 = vst [vmem:[%s178 + $0x868] sm:$0xff] %v1893
        %2203 = vst [vmem:[%s178 + $0x870] sm:$0xff] %v1894
        %2204 = vst [vmem:[%s178 + $0x878] sm:$0xff] %v1895
        %2205 = vst.msk [vmem:[%s178 + $0x880] sm:$0xff] %vm1938, %v1896
        %2206 = vst [vmem:[%s178 + $0x888] sm:$0xff] %v1897
        %2207 = vst [vmem:[%s178 + $0x890] sm:$0xff] %v1898
        %2208 = vst [vmem:[%s178 + $0x898] sm:$0xff] %v1899
        %2209 = vst [vmem:[%s178 + $0x8a0] sm:$0xff] %v1900
        %2210 = vst [vmem:[%s178 + $0x8a8] sm:$0xff] %v1901
        %2211 = vst [vmem:[%s178 + $0x8b0] sm:$0xff] %v1902
        %2212 = vst.msk [vmem:[%s178 + $0x8b8] sm:$0xff] %vm1938, %v1903
        %2213 = vst [vmem:[%s178 + $0x8c0] sm:$0xff] %v1904
        %2214 = vst [vmem:[%s178 + $0x8c8] sm:$0xff] %v1905
        %2215 = vst [vmem:[%s178 + $0x8d0] sm:$0xff] %v1906
        %2216 = vst [vmem:[%s178 + $0x8d8] sm:$0xff] %v1907
        %2217 = vst [vmem:[%s178 + $0x8e0] sm:$0xff] %v1908
        %2218 = vst [vmem:[%s178 + $0x8e8] sm:$0xff] %v1909
        %2219 = vst.msk [vmem:[%s178 + $0x8f0] sm:$0xff] %vm1938, %v1910
        %2220 = vst [vmem:[%s178 + $0x8f8] sm:$0xff] %v1911
        %2221 = vst [vmem:[%s178 + $0x900] sm:$0xff] %v1912
        %2222 = vst [vmem:[%s178 + $0x908] sm:$0xff] %v1913
        %2223 = vst [vmem:[%s178 + $0x910] sm:$0xff] %v1914
        %2224 = vst [vmem:[%s178 + $0x918] sm:$0xff] %v1915
        %2225 = vst [vmem:[%s178 + $0x920] sm:$0xff] %v1916
        %2226 = vst.msk [vmem:[%s178 + $0x928] sm:$0xff] %vm1938, %v1917
        %2227 = vst [vmem:[%s178 + $0x930] sm:$0xff] %v1918
        %2228 = vst [vmem:[%s178 + $0x938] sm:$0xff] %v1919
        %2229 = vst [vmem:[%s178 + $0x940] sm:$0xff] %v1920
        %2230 = vst [vmem:[%s178 + $0x948] sm:$0xff] %v1921
        %2231 = vst [vmem:[%s178 + $0x950] sm:$0xff] %v1922
        %2232 = vst [vmem:[%s178 + $0x958] sm:$0xff] %v1923
        %2233 = vst.msk [vmem:[%s178 + $0x960] sm:$0xff] %vm1938, %v1924
        %2234 = vst [vmem:[%s178 + $0x968] sm:$0xff] %v1925
        %2235 = vst [vmem:[%s178 + $0x970] sm:$0xff] %v1926
        %2236 = vst [vmem:[%s178 + $0x978] sm:$0xff] %v1927
        %2237 = vst [vmem:[%s178 + $0x980] sm:$0xff] %v1928
        %2238 = vst [vmem:[%s178 + $0x988] sm:$0xff] %v1929
        %2239 = vst [vmem:[%s178 + $0x990] sm:$0xff] %v1930
        %2240 = vst.msk [vmem:[%s178 + $0x998] sm:$0xff] %vm1938, %v1931
        %s2241 = sand.u32 %s73, 1
        %s2242 = sand.u32 %s73, 1
        %s2243 = smul.addr %s2242, 2464
        %s2244 = scalar_lea.vmem [#allocation2], %s2243
        // Predicated region
        $region29: #{tpu_custom_call.1} parent=27 // pred_check
          %p2245 = pneg %p83
        $region30: #{tpu_custom_call.1} parent=27 // pred_check_branch
          %2247 = sbr.rel (%p2245) target = $region32
        $region31: #{tpu_custom_call.1} parent=27 // pred_region
          %s2248 = smul.u32 44, %s13
          %s2249 = ssub.s32 87, %s2248
          %p2250 = scmp.lt.s32.totalorder %s2249, 44
          %s2251 = scalar_select %p2250, %s2249, 44
          %s2252 = smul.u32 8, %s2251
          %s2253 = smul.u32 %s2252, 7
          %p2254 = scmp.ne.s32.totalorder 0, %s2253
          %s2255 = smul.addr %s2248, 7
          %s2256 = smul.addr %s2255, 8
          %s2257 = scalar_lea.vmem %s2, %s2256
          // Predicated region
          $region33: #{tpu_custom_call.1} parent=31 // pred_check
            %p2258 = pneg %p2254
          $region34: #{tpu_custom_call.1} parent=31 // pred_check_branch
            %2260 = sbr.rel (%p2258) target = $region36
          $region35: #{tpu_custom_call.1} parent=31 // pred_region
            // Predicated region
            $region37: #{tpu_custom_call.1} parent=35 // pred_check
              _
            $region38: #{tpu_custom_call.1} parent=35 // pred_check_branch
              %2262 = sbr.rel (0) target = $region40
            $region39: #{tpu_custom_call.1} parent=35 // pred_region
              %s2263 = sdiv.u32.pop %s2251, 5
              %s2264 = srem.u32.pop %s2251, 5
              // While loop
              $region41: #{tpu_custom_call.1} parent=39 // loop_pre_header
                _
              $region42: #{tpu_custom_call.1} parent=39 // loop_header
                %s2266 = sphi 0, %s2268
                %p2267 = scmp.ge.s32.totalorder %s2266, %s2263
                %s2271 = sphi 0, %s2346
                %s2272 = sphi %s2244, %s2349
                %s2273 = sphi %s2257, %s2350
              $region43: #{tpu_custom_call.1} parent=39 // loop_header_branch
                %2270 = sbr.rel (%p2267) target = $region47
              $region44: #{tpu_custom_call.1} parent=39 // loop_body
                %v2274 = vld [vmem:[%s2272] sm:$0xff]
                %2275 = vst [vmem:[%s2273] sm:$0xff] %v2274
                %v2276 = vld [vmem:[%s2272 + $0x38] sm:$0xff]
                %2277 = vst [vmem:[%s2273 + $0x38] sm:$0xff] %v2276
                %v2278 = vld [vmem:[%s2272 + $0x70] sm:$0xff]
                %2279 = vst [vmem:[%s2273 + $0x70] sm:$0xff] %v2278
                %v2280 = vld [vmem:[%s2272 + $0xa8] sm:$0xff]
                %2281 = vst [vmem:[%s2273 + $0xa8] sm:$0xff] %v2280
                %v2282 = vld [vmem:[%s2272 + $0xe0] sm:$0xff]
                %2283 = vst [vmem:[%s2273 + $0xe0] sm:$0xff] %v2282
                %v2284 = vld [vmem:[%s2272 + $0x8] sm:$0xff]
                %2285 = vst [vmem:[%s2273 + $0x8] sm:$0xff] %v2284
                %v2286 = vld [vmem:[%s2272 + $0x40] sm:$0xff]
                %2287 = vst [vmem:[%s2273 + $0x40] sm:$0xff] %v2286
                %v2288 = vld [vmem:[%s2272 + $0x78] sm:$0xff]
                %2289 = vst [vmem:[%s2273 + $0x78] sm:$0xff] %v2288
                %v2290 = vld [vmem:[%s2272 + $0xb0] sm:$0xff]
                %2291 = vst [vmem:[%s2273 + $0xb0] sm:$0xff] %v2290
                %v2292 = vld [vmem:[%s2272 + $0xe8] sm:$0xff]
                %2293 = vst [vmem:[%s2273 + $0xe8] sm:$0xff] %v2292
                %v2294 = vld [vmem:[%s2272 + $0x10] sm:$0xff]
                %2295 = vst [vmem:[%s2273 + $0x10] sm:$0xff] %v2294
                %v2296 = vld [vmem:[%s2272 + $0x48] sm:$0xff]
                %2297 = vst [vmem:[%s2273 + $0x48] sm:$0xff] %v2296
                %v2298 = vld [vmem:[%s2272 + $0x80] sm:$0xff]
                %2299 = vst [vmem:[%s2273 + $0x80] sm:$0xff] %v2298
                %v2300 = vld [vmem:[%s2272 + $0xb8] sm:$0xff]
                %2301 = vst [vmem:[%s2273 + $0xb8] sm:$0xff] %v2300
                %v2302 = vld [vmem:[%s2272 + $0xf0] sm:$0xff]
                %2303 = vst [vmem:[%s2273 + $0xf0] sm:$0xff] %v2302
                %v2304 = vld [vmem:[%s2272 + $0x18] sm:$0xff]
                %2305 = vst [vmem:[%s2273 + $0x18] sm:$0xff] %v2304
                %v2306 = vld [vmem:[%s2272 + $0x50] sm:$0xff]
                %2307 = vst [vmem:[%s2273 + $0x50] sm:$0xff] %v2306
                %v2308 = vld [vmem:[%s2272 + $0x88] sm:$0xff]
                %2309 = vst [vmem:[%s2273 + $0x88] sm:$0xff] %v2308
                %v2310 = vld [vmem:[%s2272 + $0xc0] sm:$0xff]
                %2311 = vst [vmem:[%s2273 + $0xc0] sm:$0xff] %v2310
                %v2312 = vld [vmem:[%s2272 + $0xf8] sm:$0xff]
                %2313 = vst [vmem:[%s2273 + $0xf8] sm:$0xff] %v2312
                %v2314 = vld [vmem:[%s2272 + $0x20] sm:$0xff]
                %2315 = vst [vmem:[%s2273 + $0x20] sm:$0xff] %v2314
                %v2316 = vld [vmem:[%s2272 + $0x58] sm:$0xff]
                %2317 = vst [vmem:[%s2273 + $0x58] sm:$0xff] %v2316
                %v2318 = vld [vmem:[%s2272 + $0x90] sm:$0xff]
                %2319 = vst [vmem:[%s2273 + $0x90] sm:$0xff] %v2318
                %v2320 = vld [vmem:[%s2272 + $0xc8] sm:$0xff]
                %2321 = vst [vmem:[%s2273 + $0xc8] sm:$0xff] %v2320
                %v2322 = vld [vmem:[%s2272 + $0x100] sm:$0xff]
                %2323 = vst [vmem:[%s2273 + $0x100] sm:$0xff] %v2322
                %v2324 = vld [vmem:[%s2272 + $0x28] sm:$0xff]
                %2325 = vst [vmem:[%s2273 + $0x28] sm:$0xff] %v2324
                %v2326 = vld [vmem:[%s2272 + $0x60] sm:$0xff]
                %2327 = vst [vmem:[%s2273 + $0x60] sm:$0xff] %v2326
                %v2328 = vld [vmem:[%s2272 + $0x98] sm:$0xff]
                %2329 = vst [vmem:[%s2273 + $0x98] sm:$0xff] %v2328
                %v2330 = vld [vmem:[%s2272 + $0xd0] sm:$0xff]
                %2331 = vst [vmem:[%s2273 + $0xd0] sm:$0xff] %v2330
                %v2332 = vld [vmem:[%s2272 + $0x108] sm:$0xff]
                %2333 = vst [vmem:[%s2273 + $0x108] sm:$0xff] %v2332
                %v2334 = vld [vmem:[%s2272 + $0x30] sm:$0xff]
                %2335 = vst [vmem:[%s2273 + $0x30] sm:$0xff] %v2334
                %v2336 = vld [vmem:[%s2272 + $0x68] sm:$0xff]
                %2337 = vst [vmem:[%s2273 + $0x68] sm:$0xff] %v2336
                %v2338 = vld [vmem:[%s2272 + $0xa0] sm:$0xff]
                %2339 = vst [vmem:[%s2273 + $0xa0] sm:$0xff] %v2338
                %v2340 = vld [vmem:[%s2272 + $0xd8] sm:$0xff]
                %2341 = vst [vmem:[%s2273 + $0xd8] sm:$0xff] %v2340
                %v2342 = vld [vmem:[%s2272 + $0x110] sm:$0xff]
                %2343 = vst [vmem:[%s2273 + $0x110] sm:$0xff] %v2342
                %s2344 = sadd.s32 1, %s2271
                %p2345 = scmp.ge.s32.totalorder %s2344, %s2263
                %s2346 = scalar_select %p2345, 0, %s2344
                %s2347 = smul.u32 %s2346, 280
                %s2348 = smul.u32 %s2346, 280
                %s2349 = scalar_lea.vmem %s2244, %s2347 [#allocation2]
                %s2350 = scalar_lea.vmem %s2257, %s2348
              $region45: #{tpu_custom_call.1} parent=39 // loop_footer
                %s2268 = sadd.s32 %s2266, 1
              $region46: #{tpu_custom_call.1} parent=39 // loop_footer_branch
                %2265 = sbr.rel target = $region42
              $region47: #{tpu_custom_call.1} parent=39 // loop_exit
                _
              %s2351 = sdiv.u32.pop %s2251, 5
              %s2352 = srem.u32.pop %s2251, 5
              %s2353 = smul.u32 %s2351, 5
              %s2354 = smul.u32 56, %s2353
              %s2355 = scalar_lea.vmem %s2244, %s2354 [#allocation2]
              %s2356 = smul.u32 56, %s2353
              %s2357 = scalar_lea.vmem %s2257, %s2356
              // While loop
              $region48: #{tpu_custom_call.1} parent=39 // loop_pre_header
                _
              $region49: #{tpu_custom_call.1} parent=39 // loop_header
                %s2359 = sphi 0, %s2361
                %p2360 = scmp.ge.s32.totalorder %s2359, %s2352
                %s2364 = sphi 0, %s2383
                %s2365 = sphi %s2355, %s2386
                %s2366 = sphi %s2357, %s2387
              $region50: #{tpu_custom_call.1} parent=39 // loop_header_branch
                %2363 = sbr.rel (%p2360) target = $region54
              $region51: #{tpu_custom_call.1} parent=39 // loop_body
                %v2367 = vld [vmem:[%s2365] sm:$0xff]
                %2368 = vst [vmem:[%s2366] sm:$0xff] %v2367
                %v2369 = vld [vmem:[%s2365 + $0x8] sm:$0xff]
                %2370 = vst [vmem:[%s2366 + $0x8] sm:$0xff] %v2369
                %v2371 = vld [vmem:[%s2365 + $0x10] sm:$0xff]
                %2372 = vst [vmem:[%s2366 + $0x10] sm:$0xff] %v2371
                %v2373 = vld [vmem:[%s2365 + $0x18] sm:$0xff]
                %2374 = vst [vmem:[%s2366 + $0x18] sm:$0xff] %v2373
                %v2375 = vld [vmem:[%s2365 + $0x20] sm:$0xff]
                %2376 = vst [vmem:[%s2366 + $0x20] sm:$0xff] %v2375
                %v2377 = vld [vmem:[%s2365 + $0x28] sm:$0xff]
                %2378 = vst [vmem:[%s2366 + $0x28] sm:$0xff] %v2377
                %v2379 = vld [vmem:[%s2365 + $0x30] sm:$0xff]
                %2380 = vst [vmem:[%s2366 + $0x30] sm:$0xff] %v2379
                %s2381 = sadd.s32 1, %s2364
                %p2382 = scmp.ge.s32.totalorder %s2381, %s2352
                %s2383 = scalar_select %p2382, 0, %s2381
                %s2384 = smul.u32 %s2383, 56
                %s2385 = smul.u32 %s2383, 56
                %s2386 = scalar_lea.vmem %s2355, %s2384 [#allocation2]
                %s2387 = scalar_lea.vmem %s2357, %s2385
              $region52: #{tpu_custom_call.1} parent=39 // loop_footer
                %s2361 = sadd.s32 %s2359, 1
              $region53: #{tpu_custom_call.1} parent=39 // loop_footer_branch
                %2358 = sbr.rel target = $region49
              $region54: #{tpu_custom_call.1} parent=39 // loop_exit
                _
            $region40: #{tpu_custom_call.1} parent=35 // pred_fallthru
              _
            // Predicated region
            $region55: #{tpu_custom_call.1} parent=35 // pred_check
              _
            $region56: #{tpu_custom_call.1} parent=35 // pred_check_branch
              %2389 = sbr.rel target = $region58
            $region57: #{tpu_custom_call.1} parent=35 // pred_region
              _
            $region58: #{tpu_custom_call.1} parent=35 // pred_fallthru
              _
          $region36: #{tpu_custom_call.1} parent=31 // pred_fallthru
            _
          %2390 = vnop
        $region32: #{tpu_custom_call.1} parent=27 // pred_fallthru
          _
      $region28: #{tpu_custom_call.1} parent=5 // pred_fallthru
        _
      %p2391 = scmp.le.s32.totalorder 2, %s8
      // Predicated region
      $region59: #{tpu_custom_call.1} parent=5 // pred_check
        %p2392 = pneg %p2391
      $region60: #{tpu_custom_call.1} parent=5 // pred_check_branch
        %2394 = sbr.rel (%p2392) target = $region62
      $region61: #{tpu_custom_call.1} parent=5 // pred_region
        %s2395 = ssub.s32 %s8, 2
        // Predicated region
        $region63: #{tpu_custom_call.1} parent=61 // pred_check
          %p2396 = pneg %p89
        $region64: #{tpu_custom_call.1} parent=61 // pred_check_branch
          %2398 = sbr.rel (%p2396) target = $region66
        $region65: #{tpu_custom_call.1} parent=61 // pred_region
          %s2399 = sand.u32 %s74, 1
          %s2400 = sand.u32 %s74, 1
          %s2401 = smul.addr %s2400, 2464
          %s2402 = scalar_lea.vmem [#allocation2], %s2401
        $region66: #{tpu_custom_call.1} parent=61 // pred_fallthru
          _
      $region62: #{tpu_custom_call.1} parent=5 // pred_fallthru
        _
    $region6: #{tpu_custom_call.1} parent=1 // loop_footer
      %s12 = sadd.s32 1, %s8
    $region7: #{tpu_custom_call.1} parent=1 // loop_footer_branch
      %7 = sbr.rel target = $region3
    $region8: #{tpu_custom_call.1} parent=1 // loop_exit
      _

</llo_original>
